<compile_context>
chip_gen: v7x
topology: tpu7x:2x2x1
jax: 0.10.0
libtpu: 0.0.40
codegen_flags: <defaults>
</compile_context>

<pallas_src>
import functools
import math

import jax
import jax.numpy as jnp
from jax.experimental import pallas as pl
from jax.experimental.pallas import tpu as pltpu


def _round_up(x, m):
    return ((x + m - 1) // m) * m


def _lookup_kernel(idx_ref, e_tab_ref, r_tab_ref, out_ref, *, d, precision):
    """One grid step: gather + concat embeddings for a tb-row tile."""
    idx = idx_ref[...]              # (tb, 3) int32 — one block, three columns
    e_tab = e_tab_ref[...]          # (num_e, D) f32, resident in VMEM
    r_tab = r_tab_ref[...]          # (num_r, D) f32, resident in VMEM
    tb = idx.shape[0]

    def gather_rows(idx_col, tab):
        # idx_col: (rows, 1) int32; tab: (n, D) f32.
        # Gather-as-matmul on the (otherwise idle) MXU:
        #   one-hot (rows, n) @ (n, D) -> (rows, D).
        # HIGHEST precision keeps the 0/1 matmul an exact row copy.
        # Out-of-range / negative ids produce an all-zero one-hot row — memory
        # safe, but note it differs from torch.nn.Embedding (which errors).
        rows = idx_col.shape[0]
        n = tab.shape[0]
        row_ids = jax.lax.broadcasted_iota(jnp.int32, (rows, n), 1)
        onehot = (row_ids == idx_col).astype(tab.dtype)   # lane-broadcast of (rows,1)
        return jnp.dot(onehot, tab, preferred_element_type=jnp.float32,
                       precision=precision)

    # Head + tail both read the entity table: fuse them into ONE matmul
    # (identical FLOPs, one fewer MXU push/drain and iota/compare pass).
    ht_idx = jnp.concatenate([idx[:, 0:1], idx[:, 2:3]], axis=0)   # (2*tb, 1)
    ht_emb = gather_rows(ht_idx, e_tab)                            # (2*tb, D)
    r_emb = gather_rows(idx[:, 1:2], r_tab)                        # (tb, D)

    # Three full (tb, D) lane-dense slab stores (D % 128 == 0 -> unmasked vst).
    out_ref[:, 0:d] = ht_emb[:tb].astype(out_ref.dtype)
    out_ref[:, d:2 * d] = r_emb.astype(out_ref.dtype)
    out_ref[:, 2 * d:3 * d] = ht_emb[tb:].astype(out_ref.dtype)


def _build_call(B, num_e, num_r, D, tb, *, single_buffer_tables, precision):
    table_kwargs = {}
    if single_buffer_tables:
        # Constant index_map -> the second pipeline buffer is never used; ask
        # for a single buffer to halve the tables' VMEM footprint.
        table_kwargs["pipeline_mode"] = pl.Buffered(1)

    kernel = functools.partial(_lookup_kernel, d=D, precision=precision)
    return pl.pallas_call(
        kernel,
        grid=(pl.cdiv(B, tb),),
        in_specs=[
            # Single (tb, 3) id block per step.
            pl.BlockSpec((tb, 3), lambda b: (b, 0)),
            # Full embedding tables resident in VMEM (constant index_map, so
            # they are DMA'd only once across the whole grid).
            pl.BlockSpec((num_e, D), lambda b: (0, 0), **table_kwargs),
            pl.BlockSpec((num_r, D), lambda b: (0, 0), **table_kwargs),
        ],
        out_specs=pl.BlockSpec((tb, 3 * D), lambda b: (b, 0)),
        out_shape=jax.ShapeDtypeStruct((B, 3 * D), jnp.float32),
        compiler_params=pltpu.CompilerParams(
            dimension_semantics=("parallel",),
            # Explicit scoped-VMEM budget: <= default scope on v6e/v7x, and
            # above v5e's 16 MiB default while staying far under physical.
            vmem_limit_bytes=32 * 1024 * 1024,
        ),
    )


def lookup_embedding(X, embedding_e, embedding_r, *, tb=None):
    """X: (B, 3) int; embedding_e: (num_e, D) f32; embedding_r: (num_r, D) f32."""
    B = X.shape[0]
    num_e, D = embedding_e.shape
    num_r, Dr = embedding_r.shape
    assert D == Dr, "entity / relation embedding dims must match"

    if tb is None:
        # One big row tile amortizes the ~0.35 us per-grid-step fixed overhead.
        # Cap it so the double-buffered (tb, 3D) output tiles plus the fused
        # (2*tb, num_e)/(tb, num_r) one-hot temporaries stay a small slice of
        # the 32 MiB scoped-VMEM budget.
        out_row_bytes = 2 * 3 * D * 4                      # 2 pipeline buffers
        onehot_row_bytes = (2 * num_e + num_r) * 4         # fused h/t + r one-hots
        budget = 8 * 1024 * 1024
        cap = min(2048, budget // max(out_row_bytes + onehot_row_bytes, 1))
        cap = max(8, (cap // 8) * 8)
        tb = min(cap, _round_up(B, 8))
    tb = max(8, _round_up(tb, 8))

    idx = X.astype(jnp.int32)   # (B, 3): single index operand, no column slices

    try:
        call = _build_call(B, num_e, num_r, D, tb,
                           single_buffer_tables=True,
                           precision=jax.lax.Precision.HIGHEST)
        return call(idx, embedding_e, embedding_r)
    except Exception:
        # Compatibility fallback for jax/libtpu builds that reject
        # pipeline_mode=pl.Buffered(1) or HIGHEST-precision f32 MXU matmuls
        # inside pallas_call.  Semantics are identical; gathered rows then
        # round through the default single-pass bf16 MXU path (<~1e-3 abs).
        call = _build_call(B, num_e, num_r, D, tb,
                           single_buffer_tables=False, precision=None)
        return call(idx, embedding_e, embedding_r)


def init_params(key, num_e, num_r, emb_dim):
    """Deterministic parameter init matching LookupEmbedding.__init__ semantics."""
    k_e, k_r = jax.random.split(key)
    bound = 6.0 / math.sqrt(emb_dim)
    embedding_e = jax.random.uniform(
        k_e, (num_e, emb_dim), dtype=jnp.float32, minval=-bound, maxval=bound)
    embedding_r = jax.random.uniform(
        k_r, (num_r, emb_dim), dtype=jnp.float32, minval=-bound, maxval=bound)
    # Relation embeddings L2-normalized per row (as in __init__).
    r_norm = jnp.linalg.norm(embedding_r, ord=2, axis=1, keepdims=True)
    embedding_r = embedding_r / r_norm
    return embedding_e, embedding_r


if __name__ == "__main__":
    key = jax.random.PRNGKey(0)

    emb_dim = 128   # multiple of 128 -> lane-dense, unmasked slab stores
    num_e = 64
    num_r = 16
    B = 16

    k_params, k_h, k_r, k_t = jax.random.split(key, 4)
    embedding_e, embedding_r = init_params(k_params, num_e, num_r, emb_dim)

    h = jax.random.randint(k_h, (B,), 0, num_e, dtype=jnp.int32)
    r = jax.random.randint(k_r, (B,), 0, num_r, dtype=jnp.int32)
    t = jax.random.randint(k_t, (B,), 0, num_e, dtype=jnp.int32)
    X = jnp.stack([h, r, t], axis=1)  # (B, 3) int32

    out = jax.block_until_ready(lookup_embedding(X, embedding_e, embedding_r))

    # Pure-JAX reference.  With Precision.HIGHEST the one-hot gather is an
    # exact row copy; the tolerance below only exists to also cover the
    # default-precision compatibility fallback (worst case ~1e-3 abs).
    ref = jnp.concatenate(
        [embedding_e[X[:, 0]], embedding_r[X[:, 1]], embedding_e[X[:, 2]]], axis=1)
    assert out.shape == (B, 3 * emb_dim)
    assert out.dtype == jnp.float32
    assert jnp.allclose(out, ref, rtol=0.0, atol=2e-3), "mismatch vs reference"

    # Ragged batch: exercises the Pallas-masked ragged last block
    # (no wrapper padding, no out[:B] copy).
    Xr = X[:13]
    out_r = jax.block_until_ready(lookup_embedding(Xr, embedding_e, embedding_r))
    assert out_r.shape == (13, 3 * emb_dim)
    assert jnp.allclose(out_r, ref[:13], rtol=0.0, atol=2e-3), "ragged mismatch"

    print("KERNEL_OK")
</pallas_src>

<mosaic_0001>
module attributes {stable_mosaic.version = 11 : i64} {
  func.func @_lookup_kernel(%arg0: i32, %arg1: memref<16x3xi32, #tpu.memory_space<vmem>>, %arg2: memref<64x128xf32, #tpu.memory_space<vmem>>, %arg3: memref<16x128xf32, #tpu.memory_space<vmem>>, %arg4: memref<16x384xf32, #tpu.memory_space<vmem>>) attributes {dimension_semantics = [#tpu.dimension_semantics<parallel>], iteration_bounds = array<i64: 1>, scalar_prefetch = 0 : i64, scratch_operands = 0 : i64, tpu.core_type = #tpu.core_type<tc>, window_params = [{transform_indices = @transform_0, window_bounds = array<i64: 16, 3>}, {pipeline_mode = #tpu.pipeline_mode<synchronous>, transform_indices = @transform_1, window_bounds = array<i64: 64, 128>}, {pipeline_mode = #tpu.pipeline_mode<synchronous>, transform_indices = @transform_2, window_bounds = array<i64: 16, 128>}, {transform_indices = @transform_3, window_bounds = array<i64: 16, 384>}]} {
    %c0 = arith.constant 0 : index
    %c0_0 = arith.constant 0 : index
    %0 = vector.load %arg1[%c0, %c0_0] : memref<16x3xi32, #tpu.memory_space<vmem>>, vector<16x3xi32>
    %c0_1 = arith.constant 0 : index
    %c0_2 = arith.constant 0 : index
    %1 = vector.load %arg2[%c0_1, %c0_2] : memref<64x128xf32, #tpu.memory_space<vmem>>, vector<64x128xf32>
    %c0_3 = arith.constant 0 : index
    %c0_4 = arith.constant 0 : index
    %2 = vector.load %arg3[%c0_3, %c0_4] : memref<16x128xf32, #tpu.memory_space<vmem>>, vector<16x128xf32>
    %3 = vector.extract_strided_slice %0 {offsets = [0, 0], sizes = [16, 1], strides = [1, 1]} : vector<16x3xi32> to vector<16x1xi32>
    %4 = vector.extract_strided_slice %0 {offsets = [0, 2], sizes = [16, 1], strides = [1, 1]} : vector<16x3xi32> to vector<16x1xi32>
    %5 = tpu.concatenate %3, %4 in 0 : vector<16x1xi32>, vector<16x1xi32> -> vector<32x1xi32>
    %6 = tpu.iota {dimensions = array<i32: 1>} : vector<32x64xi32>
    %7 = vector.broadcast %5 : vector<32x1xi32> to vector<32x64xi32>
    %8 = arith.cmpi eq, %6, %7 : vector<32x64xi32>
    %9 = arith.extui %8 : vector<32x64xi1> to vector<32x64xi32>
    %10 = arith.sitofp %9 : vector<32x64xi32> to vector<32x64xf32>
    %cst = arith.constant dense<0.000000e+00> : vector<32x128xf32>
    %11 = tpu.matmul %10, %1, %cst {dimension_numbers = #tpu.dot_dimension_numbers<[1], [0], [0], [1], [0, 0, 1, 1], [], []>, precision = #tpu.contract_precision<fp32>} : vector<32x64xf32>, vector<64x128xf32>, vector<32x128xf32> -> vector<32x128xf32>
    %12 = vector.extract_strided_slice %0 {offsets = [0, 1], sizes = [16, 1], strides = [1, 1]} : vector<16x3xi32> to vector<16x1xi32>
    %13 = tpu.iota {dimensions = array<i32: 1>} : vector<16x16xi32>
    %14 = vector.broadcast %12 : vector<16x1xi32> to vector<16x16xi32>
    %15 = arith.cmpi eq, %13, %14 : vector<16x16xi32>
    %16 = arith.extui %15 : vector<16x16xi1> to vector<16x16xi32>
    %17 = arith.sitofp %16 : vector<16x16xi32> to vector<16x16xf32>
    %cst_5 = arith.constant dense<0.000000e+00> : vector<16x128xf32>
    %18 = tpu.matmul %17, %2, %cst_5 {dimension_numbers = #tpu.dot_dimension_numbers<[1], [0], [0], [1], [0, 0, 1, 1], [], []>, precision = #tpu.contract_precision<fp32>} : vector<16x16xf32>, vector<16x128xf32>, vector<16x128xf32> -> vector<16x128xf32>
    %19 = vector.extract_strided_slice %11 {offsets = [0, 0], sizes = [16, 128], strides = [1, 1]} : vector<32x128xf32> to vector<16x128xf32>
    %c0_6 = arith.constant 0 : index
    %c0_7 = arith.constant 0 : index
    %20 = vector.load %arg4[%c0_6, %c0_7] : memref<16x384xf32, #tpu.memory_space<vmem>>, vector<16x128xf32>
    tpu.vector_store %arg4[%c0_6, %c0_7], %19 {strides = array<i32>} : memref<16x384xf32, #tpu.memory_space<vmem>>, vector<16x128xf32>,
    %c0_8 = arith.constant 0 : index
    %c128 = arith.constant 128 : index
    %21 = vector.load %arg4[%c0_8, %c128] : memref<16x384xf32, #tpu.memory_space<vmem>>, vector<16x128xf32>
    tpu.vector_store %arg4[%c0_8, %c128], %18 {strides = array<i32>} : memref<16x384xf32, #tpu.memory_space<vmem>>, vector<16x128xf32>,
    %22 = vector.extract_strided_slice %11 {offsets = [16, 0], sizes = [16, 128], strides = [1, 1]} : vector<32x128xf32> to vector<16x128xf32>
    %c0_9 = arith.constant 0 : index
    %c256 = arith.constant 256 : index
    %23 = vector.load %arg4[%c0_9, %c256] : memref<16x384xf32, #tpu.memory_space<vmem>>, vector<16x128xf32>
    tpu.vector_store %arg4[%c0_9, %c256], %22 {strides = array<i32>} : memref<16x384xf32, #tpu.memory_space<vmem>>, vector<16x128xf32>,
    return
  }
  func.func @transform_0(%arg0: i32) -> (i32, i32) {
    %c0_i32 = arith.constant 0 : i32
    %c0_i32_0 = arith.constant 0 : i32
    return %arg0, %c0_i32 : i32, i32
  }
  func.func @transform_1(%arg0: i32) -> (i32, i32) {
    %c0_i32 = arith.constant 0 : i32
    %c0_i32_0 = arith.constant 0 : i32
    %c0_i32_1 = arith.constant 0 : i32
    return %c0_i32, %c0_i32_0 : i32, i32
  }
  func.func @transform_2(%arg0: i32) -> (i32, i32) {
    %c0_i32 = arith.constant 0 : i32
    %c0_i32_0 = arith.constant 0 : i32
    %c0_i32_1 = arith.constant 0 : i32
    return %c0_i32, %c0_i32_0 : i32, i32
  }
  func.func @transform_3(%arg0: i32) -> (i32, i32) {
    %c0_i32 = arith.constant 0 : i32
    %c0_i32_0 = arith.constant 0 : i32
    return %arg0, %c0_i32 : i32, i32
  }
}

module attributes {stable_mosaic.version = 11 : i64} {
  func.func @_lookup_kernel(%arg0: i32, %arg1: memref<16x3xi32, #tpu.memory_space<vmem>>, %arg2: memref<64x128xf32, #tpu.memory_space<vmem>>, %arg3: memref<16x128xf32, #tpu.memory_space<vmem>>, %arg4: memref<16x384xf32, #tpu.memory_space<vmem>>) attributes {dimension_semantics = [#tpu.dimension_semantics<parallel>], iteration_bounds = array<i64: 1>, scalar_prefetch = 0 : i64, scratch_operands = 0 : i64, tpu.core_type = #tpu.core_type<tc>, window_params = [{transform_indices = @transform_0, window_bounds = array<i64: 16, 3>}, {pipeline_mode = #tpu.pipeline_mode<synchronous>, transform_indices = @transform_1, window_bounds = array<i64: 64, 128>}, {pipeline_mode = #tpu.pipeline_mode<synchronous>, transform_indices = @transform_2, window_bounds = array<i64: 16, 128>}, {transform_indices = @transform_3, window_bounds = array<i64: 16, 384>}]} {
    %c0 = arith.constant 0 : index
    %c0_0 = arith.constant 0 : index
    %0 = vector.load %arg1[%c0, %c0_0] : memref<16x3xi32, #tpu.memory_space<vmem>>, vector<16x3xi32>
    %c0_1 = arith.constant 0 : index
    %c0_2 = arith.constant 0 : index
    %1 = vector.load %arg2[%c0_1, %c0_2] : memref<64x128xf32, #tpu.memory_space<vmem>>, vector<64x128xf32>
    %c0_3 = arith.constant 0 : index
    %c0_4 = arith.constant 0 : index
    %2 = vector.load %arg3[%c0_3, %c0_4] : memref<16x128xf32, #tpu.memory_space<vmem>>, vector<16x128xf32>
    %3 = vector.extract_strided_slice %0 {offsets = [0, 0], sizes = [16, 1], strides = [1, 1]} : vector<16x3xi32> to vector<16x1xi32>
    %4 = vector.extract_strided_slice %0 {offsets = [0, 2], sizes = [16, 1], strides = [1, 1]} : vector<16x3xi32> to vector<16x1xi32>
    %5 = tpu.concatenate %3, %4 in 0 : vector<16x1xi32>, vector<16x1xi32> -> vector<32x1xi32>
    %6 = tpu.iota {dimensions = array<i32: 1>} : vector<32x64xi32>
    %7 = vector.broadcast %5 : vector<32x1xi32> to vector<32x64xi32>
    %8 = arith.cmpi eq, %6, %7 : vector<32x64xi32>
    %9 = arith.extui %8 : vector<32x64xi1> to vector<32x64xi32>
    %10 = arith.sitofp %9 : vector<32x64xi32> to vector<32x64xf32>
    %cst = arith.constant dense<0.000000e+00> : vector<32x128xf32>
    %11 = tpu.matmul %10, %1, %cst {dimension_numbers = #tpu.dot_dimension_numbers<[1], [0], [0], [1], [0, 0, 1, 1], [], []>} : vector<32x64xf32>, vector<64x128xf32>, vector<32x128xf32> -> vector<32x128xf32>
    %12 = vector.extract_strided_slice %0 {offsets = [0, 1], sizes = [16, 1], strides = [1, 1]} : vector<16x3xi32> to vector<16x1xi32>
    %13 = tpu.iota {dimensions = array<i32: 1>} : vector<16x16xi32>
    %14 = vector.broadcast %12 : vector<16x1xi32> to vector<16x16xi32>
    %15 = arith.cmpi eq, %13, %14 : vector<16x16xi32>
    %16 = arith.extui %15 : vector<16x16xi1> to vector<16x16xi32>
    %17 = arith.sitofp %16 : vector<16x16xi32> to vector<16x16xf32>
    %cst_5 = arith.constant dense<0.000000e+00> : vector<16x128xf32>
    %18 = tpu.matmul %17, %2, %cst_5 {dimension_numbers = #tpu.dot_dimension_numbers<[1], [0], [0], [1], [0, 0, 1, 1], [], []>} : vector<16x16xf32>, vector<16x128xf32>, vector<16x128xf32> -> vector<16x128xf32>
    %19 = vector.extract_strided_slice %11 {offsets = [0, 0], sizes = [16, 128], strides = [1, 1]} : vector<32x128xf32> to vector<16x128xf32>
    %c0_6 = arith.constant 0 : index
    %c0_7 = arith.constant 0 : index
    %20 = vector.load %arg4[%c0_6, %c0_7] : memref<16x384xf32, #tpu.memory_space<vmem>>, vector<16x128xf32>
    tpu.vector_store %arg4[%c0_6, %c0_7], %19 {strides = array<i32>} : memref<16x384xf32, #tpu.memory_space<vmem>>, vector<16x128xf32>,
    %c0_8 = arith.constant 0 : index
    %c128 = arith.constant 128 : index
    %21 = vector.load %arg4[%c0_8, %c128] : memref<16x384xf32, #tpu.memory_space<vmem>>, vector<16x128xf32>
    tpu.vector_store %arg4[%c0_8, %c128], %18 {strides = array<i32>} : memref<16x384xf32, #tpu.memory_space<vmem>>, vector<16x128xf32>,
    %22 = vector.extract_strided_slice %11 {offsets = [16, 0], sizes = [16, 128], strides = [1, 1]} : vector<32x128xf32> to vector<16x128xf32>
    %c0_9 = arith.constant 0 : index
    %c256 = arith.constant 256 : index
    %23 = vector.load %arg4[%c0_9, %c256] : memref<16x384xf32, #tpu.memory_space<vmem>>, vector<16x128xf32>
    tpu.vector_store %arg4[%c0_9, %c256], %22 {strides = array<i32>} : memref<16x384xf32, #tpu.memory_space<vmem>>, vector<16x128xf32>,
    return
  }
  func.func @transform_0(%arg0: i32) -> (i32, i32) {
    %c0_i32 = arith.constant 0 : i32
    %c0_i32_0 = arith.constant 0 : i32
    return %arg0, %c0_i32 : i32, i32
  }
  func.func @transform_1(%arg0: i32) -> (i32, i32) {
    %c0_i32 = arith.constant 0 : i32
    %c0_i32_0 = arith.constant 0 : i32
    %c0_i32_1 = arith.constant 0 : i32
    return %c0_i32, %c0_i32_0 : i32, i32
  }
  func.func @transform_2(%arg0: i32) -> (i32, i32) {
    %c0_i32 = arith.constant 0 : i32
    %c0_i32_0 = arith.constant 0 : i32
    %c0_i32_1 = arith.constant 0 : i32
    return %c0_i32, %c0_i32_0 : i32, i32
  }
  func.func @transform_3(%arg0: i32) -> (i32, i32) {
    %c0_i32 = arith.constant 0 : i32
    %c0_i32_0 = arith.constant 0 : i32
    return %arg0, %c0_i32 : i32, i32
  }
}

</mosaic_0001>

<llo_original>
// kernel: tpu_custom_call.1
$region0: #{tpu_custom_call.1}
  #allocation0 [shape = 'u32[]', space=smem, size = 0x4, offset = 0x4, fixed_abs, tag = 'smem constant byte address 0x4 - core index']
  #allocation1 [shape = 'u32[144,128]{1,0:T(1,128)}', space=vmem, size = 0x12000, scoped, tag = 'internal scratch']
  %s0 = inlined_call_operand.vmem [shape: s32[16,3], index: 0, kind: input, shape index: {}]
  %s1 = inlined_call_operand.hbm [shape: f32[64,128], index: 1, kind: input, shape index: {}]
  %s2 = inlined_call_operand.vmem [shape: f32[16,128], index: 2, kind: input, shape index: {}]
  %s3 = inlined_call_operand.hbm [shape: f32[16,384], index: 3, kind: output, shape index: {}]
  %s4 = sld [smem:[#allocation0]]
  $region26: #{tpu_custom_call.1} parent=0
    _
  %s6 = ssub.s32 1, %s4
  %s7 = scalar_select 0, %s6, %s4
  $region1: #{tpu_custom_call.1} parent=0
    #allocation2 [shape = 'u8[32768]{0}', space=vmem, size = 0x8000, scoped, tag = 'input window, operand 1, single buffered']
    #allocation3 [shape = 's32[1]{0}', space=sflag, size = 0x4, scoped, tag = 'scoped memory for tpu_custom_call.1']
    #allocation4 [shape = 's32[1]{0}', space=sflag, size = 0x4, scoped, tag = 'scoped memory for tpu_custom_call.1']
    #allocation5 [shape = 'u8[24576]{0}', space=vmem, size = 0x6000, scoped, tag = 'output window, operand 0, single buffered']
    %8 = vsyncpa [#allocation3], 0
    %9 = vsyncpa [#allocation4], 0
    // Predicated region
    $region2: #{tpu_custom_call.1} parent=1 // pred_check
      _
    $region3: #{tpu_custom_call.1} parent=1 // pred_check_branch
      %11 = sbr.rel (0) target = $region5
    $region4: #{tpu_custom_call.1} parent=1 // pred_region
      _
    $region5: #{tpu_custom_call.1} parent=1 // pred_fallthru
      _
    // Predicated region
    $region6: #{tpu_custom_call.1} parent=1 // pred_check
      _
    $region7: #{tpu_custom_call.1} parent=1 // pred_check_branch
      %13 = sbr.rel (0) target = $region9
    $region8: #{tpu_custom_call.1} parent=1 // pred_region
      %s15 = ssub.s32 1024, 1024
      %16 = vsyncadd [#allocation3], %s15
      %s17 = sshll.u32 [#allocation2], 4
      %s18 = int_to_ptr.vmem [resolvable:$true] %s17
      %23 = dma.hbm_to_vmem [thread:$0]  %s1, 1024, %s18, [#allocation3], 128, 128, 8
    $region9: #{tpu_custom_call.1} parent=1 // pred_fallthru
      _
    // Predicated region
    $region10: #{tpu_custom_call.1} parent=1 // pred_check
      _
    $region11: #{tpu_custom_call.1} parent=1 // pred_check_branch
      %25 = sbr.rel (0) target = $region13
    $region12: #{tpu_custom_call.1} parent=1 // pred_region
      _
    $region13: #{tpu_custom_call.1} parent=1 // pred_fallthru
      _
    // Predicated region
    $region14: #{tpu_custom_call.1} parent=1 // pred_check
      _
    $region15: #{tpu_custom_call.1} parent=1 // pred_check_branch
      %27 = sbr.rel (0) target = $region17
    $region16: #{tpu_custom_call.1} parent=1 // pred_region
      %28 = dma.done [#allocation3], 1024
    $region17: #{tpu_custom_call.1} parent=1 // pred_fallthru
      _
    %v29 = vld [vmem:[%s0] sm:$0xff]
    %v30 = vld [vmem:[%s0 + $0x8] sm:$0xff]
    %v31 = vld [vmem:[#allocation2] sm:$0xff]
    %v32 = vld [vmem:[#allocation2 + $0x8] sm:$0xff]
    %v33 = vld [vmem:[#allocation2 + $0x10] sm:$0xff]
    %v34 = vld [vmem:[#allocation2 + $0x18] sm:$0xff]
    %v35 = vld [vmem:[#allocation2 + $0x20] sm:$0xff]
    %v36 = vld [vmem:[#allocation2 + $0x28] sm:$0xff]
    %v37 = vld [vmem:[#allocation2 + $0x30] sm:$0xff]
    %v38 = vld [vmem:[#allocation2 + $0x38] sm:$0xff]
    %v39 = vld [vmem:[%s2] sm:$0xff]
    %v40 = vld [vmem:[%s2 + $0x8] sm:$0xff]
    %41 = vrot.lane.b32.xlu0 %v29, 126
    %v42 = vpop.permute.xlu0 %41
    %43 = vrot.lane.b32.xlu0 %v30, 126
    %v44 = vpop.permute.xlu0 %43
    %v45 = vlaneseq
    %v46 = vand.u32 %v45, 127
    %47 = vset.pattern.permute.xlu0 0
    %48 = vperm.xlu0 %47, %v29
    %v49 = vpop.permute.xlu0 %48
    %50 = vset.pattern.permute.xlu0 0
    %51 = vperm.xlu0 %50, %v30
    %v52 = vpop.permute.xlu0 %51
    %53 = vset.pattern.permute.xlu0 0
    %54 = vperm.xlu0 %53, %v42
    %v55 = vpop.permute.xlu0 %54
    %56 = vset.pattern.permute.xlu0 0
    %57 = vperm.xlu0 %56, %v44
    %v58 = vpop.permute.xlu0 %57
    %vm59 = vcmp.eq.s32.totalorder %v46, %v49
    %vm60 = vcmp.eq.s32.totalorder %v46, %v52
    %vm61 = vcmp.eq.s32.totalorder %v46, %v55
    %vm62 = vcmp.eq.s32.totalorder %v46, %v58
    %v63 = vsel %vm59, 1, 0
    %v64 = vsel %vm60, 1, 0
    %v65 = vsel %vm61, 1, 0
    %v66 = vsel %vm62, 1, 0
    %v67 = vcvt.s32.f32 %v63
    %v68 = vcvt.s32.f32 %v64
    %v69 = vcvt.s32.f32 %v65
    %v70 = vcvt.s32.f32 %v66
    %vm71 = vcmask 523264
    %v73 = vsel %vm71, %v67, 0
    %v76 = vsel %vm71, %v68, 0
    %v79 = vsel %vm71, %v69, 0
    %v82 = vsel %vm71, %v70, 0
    %84 = vmatprep.subr.mxu0 0.0
    %v85 = vand.u32 %v31, 4294901760
    %86 = vmatpush1.msra.mxu0 %v85
    %87 = vmatprep.subr.mxu0 0.0
    %v88 = vand.u32 %v32, 4294901760
    %89 = vmatpush1.msra.mxu0 %v88
    %90 = vmatprep.subr.mxu0 0.0
    %v91 = vand.u32 %v33, 4294901760
    %92 = vmatpush1.msra.mxu0 %v91
    %93 = vmatprep.subr.mxu0 0.0
    %v94 = vand.u32 %v34, 4294901760
    %95 = vmatpush1.msra.mxu0 %v94
    %96 = vmatprep.subr.mxu0 0.0
    %v97 = vand.u32 %v35, 4294901760
    %98 = vmatpush1.msra.mxu0 %v97
    %99 = vmatprep.subr.mxu0 0.0
    %v100 = vand.u32 %v36, 4294901760
    %101 = vmatpush1.msra.mxu0 %v100
    %102 = vmatprep.subr.mxu0 0.0
    %v103 = vand.u32 %v37, 4294901760
    %104 = vmatpush1.msra.mxu0 %v103
    %105 = vmatprep.subr.mxu0 0.0
    %v106 = vand.u32 %v38, 4294901760
    %107 = vmatpush1.msra.mxu0 %v106
    %108 = vmatprep.subr.mxu0 0.0
    %109 = vmatpush1.msra.mxu0 0.0
    %110 = vmatprep.subr.mxu0 0.0
    %111 = vmatpush1.msra.mxu0 0.0
    %112 = vmatprep.subr.mxu0 0.0
    %113 = vmatpush1.msra.mxu0 0.0
    %114 = vmatprep.subr.mxu0 0.0
    %115 = vmatpush1.msra.mxu0 0.0
    %116 = vmatprep.subr.mxu0 0.0
    %117 = vmatpush1.msra.mxu0 0.0
    %118 = vmatprep.subr.mxu0 0.0
    %119 = vmatpush1.msra.mxu0 0.0
    %120 = vmatprep.subr.mxu0 0.0
    %121 = vmatpush1.msra.mxu0 0.0
    %122 = vmatprep.subr.mxu0 0.0
    %123 = vmatpush1.msra.mxu0 0.0
    %124 = vmatprep.subr.mxu0 0.0
    %125 = vmatpush1.msra.mxu0 0.0
    %126 = vmatprep.subr.mxu0 0.0
    %127 = vmatpush1.msra.mxu0 0.0
    %128 = vmatprep.subr.mxu0 0.0
    %129 = vmatpush1.msra.mxu0 0.0
    %130 = vmatprep.subr.mxu0 0.0
    %131 = vmatpush1.msra.mxu0 0.0
    %132 = vmatprep.subr.mxu0 0.0
    %133 = vmatpush1.msra.mxu0 0.0
    %134 = vmatprep.subr.mxu0 0.0
    %135 = vmatpush1.msra.mxu0 0.0
    %136 = vmatprep.subr.mxu0 0.0
    %137 = vmatpush1.msra.mxu0 0.0
    %138 = vmatprep.subr.mxu0 0.0
    %139 = vmatpush1.msra.mxu0 0.0
    %140 = vmatprep.subr.mxu0 0.0
    %141 = vmatpush1.msra.mxu0 0.0
    %142 = vmatprep.subr.mxu0 0.0
    %143 = vmatpush1.msra.mxu0 0.0
    %144 = vmatprep.subr.mxu0 0.0
    %145 = vmatpush1.msra.mxu0 0.0
    %146 = vmatprep.subr.mxu0 0.0
    %147 = vmatpush1.msra.mxu0 0.0
    %148 = vmatprep.subr.mxu0 0.0
    %149 = vmatpush1.msra.mxu0 0.0
    %150 = vmatprep.subr.mxu0 0.0
    %151 = vmatpush1.msra.mxu0 0.0
    %152 = vmatprep.subr.mxu0 0.0
    %153 = vmatpush1.msra.mxu0 0.0
    %154 = vmatprep.subr.mxu0 0.0
    %155 = vmatpush1.msra.mxu0 0.0
    %156 = vmatprep.mubr.f32.mxu0 0.0
    %v157 = vand.u32 %v73, 4294901760
    %v158 = vsub.f32 %v73, %v157
    %v159 = vand.u32 %v158, 4294901760
    %v160 = vsub.f32 %v158, %v159
    %v161 = vand.u32 %v160, 4294901760
    %162 = vmatmul.mubr.f32.gmra.mrb[0].mxu0 %v161
    %v163 = vpop.f32.mrb[0].mxu0
    %v164 = vadd.f32 0.0, %v163
    %v165 = vpop.f32.mrb[0].mxu0
    %166 = vmatprep.mubr.f32.mxu0 0.0
    %v167 = vand.u32 %v76, 4294901760
    %v168 = vsub.f32 %v76, %v167
    %v169 = vand.u32 %v168, 4294901760
    %v170 = vsub.f32 %v168, %v169
    %v171 = vand.u32 %v170, 4294901760
    %172 = vmatmul.mubr.f32.gmra.mrb[0].mxu0 %v171
    %v173 = vpop.f32.mrb[0].mxu0
    %v174 = vadd.f32 0.0, %v173
    %v175 = vpop.f32.mrb[0].mxu0
    %176 = vmatprep.mubr.f32.mxu0 0.0
    %v177 = vand.u32 %v79, 4294901760
    %v178 = vsub.f32 %v79, %v177
    %v179 = vand.u32 %v178, 4294901760
    %v180 = vsub.f32 %v178, %v179
    %v181 = vand.u32 %v180, 4294901760
    %182 = vmatmul.mubr.f32.gmra.mrb[0].mxu0 %v181
    %v183 = vpop.f32.mrb[0].mxu0
    %v184 = vadd.f32 0.0, %v183
    %v185 = vpop.f32.mrb[0].mxu0
    %186 = vmatprep.mubr.f32.mxu0 0.0
    %v187 = vand.u32 %v82, 4294901760
    %v188 = vsub.f32 %v82, %v187
    %v189 = vand.u32 %v188, 4294901760
    %v190 = vsub.f32 %v188, %v189
    %v191 = vand.u32 %v190, 4294901760
    %192 = vmatmul.mubr.f32.gmra.mrb[0].mxu0 %v191
    %v193 = vpop.f32.mrb[0].mxu0
    %v194 = vadd.f32 0.0, %v193
    %v195 = vpop.f32.mrb[0].mxu0
    %196 = vdwg.mxu0
    %197 = vmatprep.subr.mxu0 0.0
    %v198 = vand.u32 %v31, 4294901760
    %v199 = vsub.f32 %v31, %v198
    %v200 = vand.u32 %v199, 4294901760
    %v201 = vsub.f32 %v199, %v200
    %v202 = vand.u32 %v201, 4294901760
    %203 = vmatpush1.msra.mxu0 %v202
    %204 = vmatprep.subr.mxu0 0.0
    %v205 = vand.u32 %v32, 4294901760
    %v206 = vsub.f32 %v32, %v205
    %v207 = vand.u32 %v206, 4294901760
    %v208 = vsub.f32 %v206, %v207
    %v209 = vand.u32 %v208, 4294901760
    %210 = vmatpush1.msra.mxu0 %v209
    %211 = vmatprep.subr.mxu0 0.0
    %v212 = vand.u32 %v33, 4294901760
    %v213 = vsub.f32 %v33, %v212
    %v214 = vand.u32 %v213, 4294901760
    %v215 = vsub.f32 %v213, %v214
    %v216 = vand.u32 %v215, 4294901760
    %217 = vmatpush1.msra.mxu0 %v216
    %218 = vmatprep.subr.mxu0 0.0
    %v219 = vand.u32 %v34, 4294901760
    %v220 = vsub.f32 %v34, %v219
    %v221 = vand.u32 %v220, 4294901760
    %v222 = vsub.f32 %v220, %v221
    %v223 = vand.u32 %v222, 4294901760
    %224 = vmatpush1.msra.mxu0 %v223
    %225 = vmatprep.subr.mxu0 0.0
    %v226 = vand.u32 %v35, 4294901760
    %v227 = vsub.f32 %v35, %v226
    %v228 = vand.u32 %v227, 4294901760
    %v229 = vsub.f32 %v227, %v228
    %v230 = vand.u32 %v229, 4294901760
    %231 = vmatpush1.msra.mxu0 %v230
    %232 = vmatprep.subr.mxu0 0.0
    %v233 = vand.u32 %v36, 4294901760
    %v234 = vsub.f32 %v36, %v233
    %v235 = vand.u32 %v234, 4294901760
    %v236 = vsub.f32 %v234, %v235
    %v237 = vand.u32 %v236, 4294901760
    %238 = vmatpush1.msra.mxu0 %v237
    %239 = vmatprep.subr.mxu0 0.0
    %v240 = vand.u32 %v37, 4294901760
    %v241 = vsub.f32 %v37, %v240
    %v242 = vand.u32 %v241, 4294901760
    %v243 = vsub.f32 %v241, %v242
    %v244 = vand.u32 %v243, 4294901760
    %245 = vmatpush1.msra.mxu0 %v244
    %246 = vmatprep.subr.mxu0 0.0
    %v247 = vand.u32 %v38, 4294901760
    %v248 = vsub.f32 %v38, %v247
    %v249 = vand.u32 %v248, 4294901760
    %v250 = vsub.f32 %v248, %v249
    %v251 = vand.u32 %v250, 4294901760
    %252 = vmatpush1.msra.mxu0 %v251
    %253 = vmatprep.subr.mxu0 0.0
    %254 = vmatpush1.msra.mxu0 0.0
    %255 = vmatprep.subr.mxu0 0.0
    %256 = vmatpush1.msra.mxu0 0.0
    %257 = vmatprep.subr.mxu0 0.0
    %258 = vmatpush1.msra.mxu0 0.0
    %259 = vmatprep.subr.mxu0 0.0
    %260 = vmatpush1.msra.mxu0 0.0
    %261 = vmatprep.subr.mxu0 0.0
    %262 = vmatpush1.msra.mxu0 0.0
    %263 = vmatprep.subr.mxu0 0.0
    %264 = vmatpush1.msra.mxu0 0.0
    %265 = vmatprep.subr.mxu0 0.0
    %266 = vmatpush1.msra.mxu0 0.0
    %267 = vmatprep.subr.mxu0 0.0
    %268 = vmatpush1.msra.mxu0 0.0
    %269 = vmatprep.subr.mxu0 0.0
    %270 = vmatpush1.msra.mxu0 0.0
    %271 = vmatprep.subr.mxu0 0.0
    %272 = vmatpush1.msra.mxu0 0.0
    %273 = vmatprep.subr.mxu0 0.0
    %274 = vmatpush1.msra.mxu0 0.0
    %275 = vmatprep.subr.mxu0 0.0
    %276 = vmatpush1.msra.mxu0 0.0
    %277 = vmatprep.subr.mxu0 0.0
    %278 = vmatpush1.msra.mxu0 0.0
    %279 = vmatprep.subr.mxu0 0.0
    %280 = vmatpush1.msra.mxu0 0.0
    %281 = vmatprep.subr.mxu0 0.0
    %282 = vmatpush1.msra.mxu0 0.0
    %283 = vmatprep.subr.mxu0 0.0
    %284 = vmatpush1.msra.mxu0 0.0
    %285 = vmatprep.subr.mxu0 0.0
    %286 = vmatpush1.msra.mxu0 0.0
    %287 = vmatprep.subr.mxu0 0.0
    %288 = vmatpush1.msra.mxu0 0.0
    %289 = vmatprep.subr.mxu0 0.0
    %290 = vmatpush1.msra.mxu0 0.0
    %291 = vmatprep.subr.mxu0 0.0
    %292 = vmatpush1.msra.mxu0 0.0
    %293 = vmatprep.subr.mxu0 0.0
    %294 = vmatpush1.msra.mxu0 0.0
    %295 = vmatprep.subr.mxu0 0.0
    %296 = vmatpush1.msra.mxu0 0.0
    %297 = vmatprep.subr.mxu0 0.0
    %298 = vmatpush1.msra.mxu0 0.0
    %299 = vmatprep.subr.mxu0 0.0
    %300 = vmatpush1.msra.mxu0 0.0
    %301 = vmatprep.mubr.f32.mxu0 0.0
    %v302 = vand.u32 %v73, 4294901760
    %303 = vmatmul.mubr.f32.gmra.mrb[0].mxu0 %v302
    %v304 = vpop.f32.mrb[0].mxu0
    %v305 = vadd.f32 %v164, %v304
    %v306 = vpop.f32.mrb[0].mxu0
    %307 = vmatprep.mubr.f32.mxu0 0.0
    %v308 = vand.u32 %v76, 4294901760
    %309 = vmatmul.mubr.f32.gmra.mrb[0].mxu0 %v308
    %v310 = vpop.f32.mrb[0].mxu0
    %v311 = vadd.f32 %v174, %v310
    %v312 = vpop.f32.mrb[0].mxu0
    %313 = vmatprep.mubr.f32.mxu0 0.0
    %v314 = vand.u32 %v79, 4294901760
    %315 = vmatmul.mubr.f32.gmra.mrb[0].mxu0 %v314
    %v316 = vpop.f32.mrb[0].mxu0
    %v317 = vadd.f32 %v184, %v316
    %v318 = vpop.f32.mrb[0].mxu0
    %319 = vmatprep.mubr.f32.mxu0 0.0
    %v320 = vand.u32 %v82, 4294901760
    %321 = vmatmul.mubr.f32.gmra.mrb[0].mxu0 %v320
    %v322 = vpop.f32.mrb[0].mxu0
    %v323 = vadd.f32 %v194, %v322
    %v324 = vpop.f32.mrb[0].mxu0
    %325 = vdwg.mxu0
    %326 = vmatprep.subr.mxu0 0.0
    %v327 = vand.u32 %v31, 4294901760
    %v328 = vsub.f32 %v31, %v327
    %329 = vmatpush1.msra.mxu0 %v328
    %330 = vmatprep.subr.mxu0 0.0
    %v331 = vand.u32 %v32, 4294901760
    %v332 = vsub.f32 %v32, %v331
    %333 = vmatpush1.msra.mxu0 %v332
    %334 = vmatprep.subr.mxu0 0.0
    %v335 = vand.u32 %v33, 4294901760
    %v336 = vsub.f32 %v33, %v335
    %337 = vmatpush1.msra.mxu0 %v336
    %338 = vmatprep.subr.mxu0 0.0
    %v339 = vand.u32 %v34, 4294901760
    %v340 = vsub.f32 %v34, %v339
    %341 = vmatpush1.msra.mxu0 %v340
    %342 = vmatprep.subr.mxu0 0.0
    %v343 = vand.u32 %v35, 4294901760
    %v344 = vsub.f32 %v35, %v343
    %345 = vmatpush1.msra.mxu0 %v344
    %346 = vmatprep.subr.mxu0 0.0
    %v347 = vand.u32 %v36, 4294901760
    %v348 = vsub.f32 %v36, %v347
    %349 = vmatpush1.msra.mxu0 %v348
    %350 = vmatprep.subr.mxu0 0.0
    %v351 = vand.u32 %v37, 4294901760
    %v352 = vsub.f32 %v37, %v351
    %353 = vmatpush1.msra.mxu0 %v352
    %354 = vmatprep.subr.mxu0 0.0
    %v355 = vand.u32 %v38, 4294901760
    %v356 = vsub.f32 %v38, %v355
    %357 = vmatpush1.msra.mxu0 %v356
    %358 = vmatprep.subr.mxu0 0.0
    %359 = vmatpush1.msra.mxu0 0.0
    %360 = vmatprep.subr.mxu0 0.0
    %361 = vmatpush1.msra.mxu0 0.0
    %362 = vmatprep.subr.mxu0 0.0
    %363 = vmatpush1.msra.mxu0 0.0
    %364 = vmatprep.subr.mxu0 0.0
    %365 = vmatpush1.msra.mxu0 0.0
    %366 = vmatprep.subr.mxu0 0.0
    %367 = vmatpush1.msra.mxu0 0.0
    %368 = vmatprep.subr.mxu0 0.0
    %369 = vmatpush1.msra.mxu0 0.0
    %370 = vmatprep.subr.mxu0 0.0
    %371 = vmatpush1.msra.mxu0 0.0
    %372 = vmatprep.subr.mxu0 0.0
    %373 = vmatpush1.msra.mxu0 0.0
    %374 = vmatprep.subr.mxu0 0.0
    %375 = vmatpush1.msra.mxu0 0.0
    %376 = vmatprep.subr.mxu0 0.0
    %377 = vmatpush1.msra.mxu0 0.0
    %378 = vmatprep.subr.mxu0 0.0
    %379 = vmatpush1.msra.mxu0 0.0
    %380 = vmatprep.subr.mxu0 0.0
    %381 = vmatpush1.msra.mxu0 0.0
    %382 = vmatprep.subr.mxu0 0.0
    %383 = vmatpush1.msra.mxu0 0.0
    %384 = vmatprep.subr.mxu0 0.0
    %385 = vmatpush1.msra.mxu0 0.0
    %386 = vmatprep.subr.mxu0 0.0
    %387 = vmatpush1.msra.mxu0 0.0
    %388 = vmatprep.subr.mxu0 0.0
    %389 = vmatpush1.msra.mxu0 0.0
    %390 = vmatprep.subr.mxu0 0.0
    %391 = vmatpush1.msra.mxu0 0.0
    %392 = vmatprep.subr.mxu0 0.0
    %393 = vmatpush1.msra.mxu0 0.0
    %394 = vmatprep.subr.mxu0 0.0
    %395 = vmatpush1.msra.mxu0 0.0
    %396 = vmatprep.subr.mxu0 0.0
    %397 = vmatpush1.msra.mxu0 0.0
    %398 = vmatprep.subr.mxu0 0.0
    %399 = vmatpush1.msra.mxu0 0.0
    %400 = vmatprep.subr.mxu0 0.0
    %401 = vmatpush1.msra.mxu0 0.0
    %402 = vmatprep.subr.mxu0 0.0
    %403 = vmatpush1.msra.mxu0 0.0
    %404 = vmatprep.subr.mxu0 0.0
    %405 = vmatpush1.msra.mxu0 0.0
    %406 = vmatprep.mubr.f32.mxu0 0.0
    %v407 = vand.u32 %v73, 4294901760
    %v408 = vsub.f32 %v73, %v407
    %409 = vmatmul.mubr.f32.gmra.mrb[0].mxu0 %v408
    %v410 = vpop.f32.mrb[0].mxu0
    %v411 = vadd.f32 %v305, %v410
    %v412 = vpop.f32.mrb[0].mxu0
    %413 = vmatprep.mubr.f32.mxu0 0.0
    %v414 = vand.u32 %v76, 4294901760
    %v415 = vsub.f32 %v76, %v414
    %416 = vmatmul.mubr.f32.gmra.mrb[0].mxu0 %v415
    %v417 = vpop.f32.mrb[0].mxu0
    %v418 = vadd.f32 %v311, %v417
    %v419 = vpop.f32.mrb[0].mxu0
    %420 = vmatprep.mubr.f32.mxu0 0.0
    %v421 = vand.u32 %v79, 4294901760
    %v422 = vsub.f32 %v79, %v421
    %423 = vmatmul.mubr.f32.gmra.mrb[0].mxu0 %v422
    %v424 = vpop.f32.mrb[0].mxu0
    %v425 = vadd.f32 %v317, %v424
    %v426 = vpop.f32.mrb[0].mxu0
    %427 = vmatprep.mubr.f32.mxu0 0.0
    %v428 = vand.u32 %v82, 4294901760
    %v429 = vsub.f32 %v82, %v428
    %430 = vmatmul.mubr.f32.gmra.mrb[0].mxu0 %v429
    %v431 = vpop.f32.mrb[0].mxu0
    %v432 = vadd.f32 %v323, %v431
    %v433 = vpop.f32.mrb[0].mxu0
    %434 = vdwg.mxu0
    %435 = vmatprep.subr.mxu0 0.0
    %v436 = vand.u32 %v31, 4294901760
    %437 = vmatpush1.msra.mxu0 %v436
    %438 = vmatprep.subr.mxu0 0.0
    %v439 = vand.u32 %v32, 4294901760
    %440 = vmatpush1.msra.mxu0 %v439
    %441 = vmatprep.subr.mxu0 0.0
    %v442 = vand.u32 %v33, 4294901760
    %443 = vmatpush1.msra.mxu0 %v442
    %444 = vmatprep.subr.mxu0 0.0
    %v445 = vand.u32 %v34, 4294901760
    %446 = vmatpush1.msra.mxu0 %v445
    %447 = vmatprep.subr.mxu0 0.0
    %v448 = vand.u32 %v35, 4294901760
    %449 = vmatpush1.msra.mxu0 %v448
    %450 = vmatprep.subr.mxu0 0.0
    %v451 = vand.u32 %v36, 4294901760
    %452 = vmatpush1.msra.mxu0 %v451
    %453 = vmatprep.subr.mxu0 0.0
    %v454 = vand.u32 %v37, 4294901760
    %455 = vmatpush1.msra.mxu0 %v454
    %456 = vmatprep.subr.mxu0 0.0
    %v457 = vand.u32 %v38, 4294901760
    %458 = vmatpush1.msra.mxu0 %v457
    %459 = vmatprep.subr.mxu0 0.0
    %460 = vmatpush1.msra.mxu0 0.0
    %461 = vmatprep.subr.mxu0 0.0
    %462 = vmatpush1.msra.mxu0 0.0
    %463 = vmatprep.subr.mxu0 0.0
    %464 = vmatpush1.msra.mxu0 0.0
    %465 = vmatprep.subr.mxu0 0.0
    %466 = vmatpush1.msra.mxu0 0.0
    %467 = vmatprep.subr.mxu0 0.0
    %468 = vmatpush1.msra.mxu0 0.0
    %469 = vmatprep.subr.mxu0 0.0
    %470 = vmatpush1.msra.mxu0 0.0
    %471 = vmatprep.subr.mxu0 0.0
    %472 = vmatpush1.msra.mxu0 0.0
    %473 = vmatprep.subr.mxu0 0.0
    %474 = vmatpush1.msra.mxu0 0.0
    %475 = vmatprep.subr.mxu0 0.0
    %476 = vmatpush1.msra.mxu0 0.0
    %477 = vmatprep.subr.mxu0 0.0
    %478 = vmatpush1.msra.mxu0 0.0
    %479 = vmatprep.subr.mxu0 0.0
    %480 = vmatpush1.msra.mxu0 0.0
    %481 = vmatprep.subr.mxu0 0.0
    %482 = vmatpush1.msra.mxu0 0.0
    %483 = vmatprep.subr.mxu0 0.0
    %484 = vmatpush1.msra.mxu0 0.0
    %485 = vmatprep.subr.mxu0 0.0
    %486 = vmatpush1.msra.mxu0 0.0
    %487 = vmatprep.subr.mxu0 0.0
    %488 = vmatpush1.msra.mxu0 0.0
    %489 = vmatprep.subr.mxu0 0.0
    %490 = vmatpush1.msra.mxu0 0.0
    %491 = vmatprep.subr.mxu0 0.0
    %492 = vmatpush1.msra.mxu0 0.0
    %493 = vmatprep.subr.mxu0 0.0
    %494 = vmatpush1.msra.mxu0 0.0
    %495 = vmatprep.subr.mxu0 0.0
    %496 = vmatpush1.msra.mxu0 0.0
    %497 = vmatprep.subr.mxu0 0.0
    %498 = vmatpush1.msra.mxu0 0.0
    %499 = vmatprep.subr.mxu0 0.0
    %500 = vmatpush1.msra.mxu0 0.0
    %501 = vmatprep.subr.mxu0 0.0
    %502 = vmatpush1.msra.mxu0 0.0
    %503 = vmatprep.subr.mxu0 0.0
    %504 = vmatpush1.msra.mxu0 0.0
    %505 = vmatprep.subr.mxu0 0.0
    %506 = vmatpush1.msra.mxu0 0.0
    %507 = vmatprep.mubr.f32.mxu0 0.0
    %v508 = vand.u32 %v73, 4294901760
    %v509 = vsub.f32 %v73, %v508
    %v510 = vand.u32 %v509, 4294901760
    %511 = vmatmul.mubr.f32.gmra.mrb[0].mxu0 %v510
    %v512 = vpop.f32.mrb[0].mxu0
    %v513 = vadd.f32 %v411, %v512
    %v514 = vpop.f32.mrb[0].mxu0
    %515 = vmatprep.mubr.f32.mxu0 0.0
    %v516 = vand.u32 %v76, 4294901760
    %v517 = vsub.f32 %v76, %v516
    %v518 = vand.u32 %v517, 4294901760
    %519 = vmatmul.mubr.f32.gmra.mrb[0].mxu0 %v518
    %v520 = vpop.f32.mrb[0].mxu0
    %v521 = vadd.f32 %v418, %v520
    %v522 = vpop.f32.mrb[0].mxu0
    %523 = vmatprep.mubr.f32.mxu0 0.0
    %v524 = vand.u32 %v79, 4294901760
    %v525 = vsub.f32 %v79, %v524
    %v526 = vand.u32 %v525, 4294901760
    %527 = vmatmul.mubr.f32.gmra.mrb[0].mxu0 %v526
    %v528 = vpop.f32.mrb[0].mxu0
    %v529 = vadd.f32 %v425, %v528
    %v530 = vpop.f32.mrb[0].mxu0
    %531 = vmatprep.mubr.f32.mxu0 0.0
    %v532 = vand.u32 %v82, 4294901760
    %v533 = vsub.f32 %v82, %v532
    %v534 = vand.u32 %v533, 4294901760
    %535 = vmatmul.mubr.f32.gmra.mrb[0].mxu0 %v534
    %v536 = vpop.f32.mrb[0].mxu0
    %v537 = vadd.f32 %v432, %v536
    %v538 = vpop.f32.mrb[0].mxu0
    %539 = vdwg.mxu0
    %540 = vmatprep.subr.mxu0 0.0
    %v541 = vand.u32 %v31, 4294901760
    %v542 = vsub.f32 %v31, %v541
    %v543 = vand.u32 %v542, 4294901760
    %544 = vmatpush1.msra.mxu0 %v543
    %545 = vmatprep.subr.mxu0 0.0
    %v546 = vand.u32 %v32, 4294901760
    %v547 = vsub.f32 %v32, %v546
    %v548 = vand.u32 %v547, 4294901760
    %549 = vmatpush1.msra.mxu0 %v548
    %550 = vmatprep.subr.mxu0 0.0
    %v551 = vand.u32 %v33, 4294901760
    %v552 = vsub.f32 %v33, %v551
    %v553 = vand.u32 %v552, 4294901760
    %554 = vmatpush1.msra.mxu0 %v553
    %555 = vmatprep.subr.mxu0 0.0
    %v556 = vand.u32 %v34, 4294901760
    %v557 = vsub.f32 %v34, %v556
    %v558 = vand.u32 %v557, 4294901760
    %559 = vmatpush1.msra.mxu0 %v558
    %560 = vmatprep.subr.mxu0 0.0
    %v561 = vand.u32 %v35, 4294901760
    %v562 = vsub.f32 %v35, %v561
    %v563 = vand.u32 %v562, 4294901760
    %564 = vmatpush1.msra.mxu0 %v563
    %565 = vmatprep.subr.mxu0 0.0
    %v566 = vand.u32 %v36, 4294901760
    %v567 = vsub.f32 %v36, %v566
    %v568 = vand.u32 %v567, 4294901760
    %569 = vmatpush1.msra.mxu0 %v568
    %570 = vmatprep.subr.mxu0 0.0
    %v571 = vand.u32 %v37, 4294901760
    %v572 = vsub.f32 %v37, %v571
    %v573 = vand.u32 %v572, 4294901760
    %574 = vmatpush1.msra.mxu0 %v573
    %575 = vmatprep.subr.mxu0 0.0
    %v576 = vand.u32 %v38, 4294901760
    %v577 = vsub.f32 %v38, %v576
    %v578 = vand.u32 %v577, 4294901760
    %579 = vmatpush1.msra.mxu0 %v578
    %580 = vmatprep.subr.mxu0 0.0
    %581 = vmatpush1.msra.mxu0 0.0
    %582 = vmatprep.subr.mxu0 0.0
    %583 = vmatpush1.msra.mxu0 0.0
    %584 = vmatprep.subr.mxu0 0.0
    %585 = vmatpush1.msra.mxu0 0.0
    %586 = vmatprep.subr.mxu0 0.0
    %587 = vmatpush1.msra.mxu0 0.0
    %588 = vmatprep.subr.mxu0 0.0
    %589 = vmatpush1.msra.mxu0 0.0
    %590 = vmatprep.subr.mxu0 0.0
    %591 = vmatpush1.msra.mxu0 0.0
    %592 = vmatprep.subr.mxu0 0.0
    %593 = vmatpush1.msra.mxu0 0.0
    %594 = vmatprep.subr.mxu0 0.0
    %595 = vmatpush1.msra.mxu0 0.0
    %596 = vmatprep.subr.mxu0 0.0
    %597 = vmatpush1.msra.mxu0 0.0
    %598 = vmatprep.subr.mxu0 0.0
    %599 = vmatpush1.msra.mxu0 0.0
    %600 = vmatprep.subr.mxu0 0.0
    %601 = vmatpush1.msra.mxu0 0.0
    %602 = vmatprep.subr.mxu0 0.0
    %603 = vmatpush1.msra.mxu0 0.0
    %604 = vmatprep.subr.mxu0 0.0
    %605 = vmatpush1.msra.mxu0 0.0
    %606 = vmatprep.subr.mxu0 0.0
    %607 = vmatpush1.msra.mxu0 0.0
    %608 = vmatprep.subr.mxu0 0.0
    %609 = vmatpush1.msra.mxu0 0.0
    %610 = vmatprep.subr.mxu0 0.0
    %611 = vmatpush1.msra.mxu0 0.0
    %612 = vmatprep.subr.mxu0 0.0
    %613 = vmatpush1.msra.mxu0 0.0
    %614 = vmatprep.subr.mxu0 0.0
    %615 = vmatpush1.msra.mxu0 0.0
    %616 = vmatprep.subr.mxu0 0.0
    %617 = vmatpush1.msra.mxu0 0.0
    %618 = vmatprep.subr.mxu0 0.0
    %619 = vmatpush1.msra.mxu0 0.0
    %620 = vmatprep.subr.mxu0 0.0
    %621 = vmatpush1.msra.mxu0 0.0
    %622 = vmatprep.subr.mxu0 0.0
    %623 = vmatpush1.msra.mxu0 0.0
    %624 = vmatprep.subr.mxu0 0.0
    %625 = vmatpush1.msra.mxu0 0.0
    %626 = vmatprep.subr.mxu0 0.0
    %627 = vmatpush1.msra.mxu0 0.0
    %628 = vmatprep.mubr.f32.mxu0 0.0
    %v629 = vand.u32 %v73, 4294901760
    %630 = vmatmul.mubr.f32.gmra.mrb[0].mxu0 %v629
    %v631 = vpop.f32.mrb[0].mxu0
    %v632 = vadd.f32 %v513, %v631
    %v633 = vpop.f32.mrb[0].mxu0
    %634 = vmatprep.mubr.f32.mxu0 0.0
    %v635 = vand.u32 %v76, 4294901760
    %636 = vmatmul.mubr.f32.gmra.mrb[0].mxu0 %v635
    %v637 = vpop.f32.mrb[0].mxu0
    %v638 = vadd.f32 %v521, %v637
    %v639 = vpop.f32.mrb[0].mxu0
    %640 = vmatprep.mubr.f32.mxu0 0.0
    %v641 = vand.u32 %v79, 4294901760
    %642 = vmatmul.mubr.f32.gmra.mrb[0].mxu0 %v641
    %v643 = vpop.f32.mrb[0].mxu0
    %v644 = vadd.f32 %v529, %v643
    %v645 = vpop.f32.mrb[0].mxu0
    %646 = vmatprep.mubr.f32.mxu0 0.0
    %v647 = vand.u32 %v82, 4294901760
    %648 = vmatmul.mubr.f32.gmra.mrb[0].mxu0 %v647
    %v649 = vpop.f32.mrb[0].mxu0
    %v650 = vadd.f32 %v537, %v649
    %v651 = vpop.f32.mrb[0].mxu0
    %652 = vdwg.mxu0
    %653 = vmatprep.subr.mxu0 0.0
    %v654 = vand.u32 %v31, 4294901760
    %655 = vmatpush1.msra.mxu0 %v654
    %656 = vmatprep.subr.mxu0 0.0
    %v657 = vand.u32 %v32, 4294901760
    %658 = vmatpush1.msra.mxu0 %v657
    %659 = vmatprep.subr.mxu0 0.0
    %v660 = vand.u32 %v33, 4294901760
    %661 = vmatpush1.msra.mxu0 %v660
    %662 = vmatprep.subr.mxu0 0.0
    %v663 = vand.u32 %v34, 4294901760
    %664 = vmatpush1.msra.mxu0 %v663
    %665 = vmatprep.subr.mxu0 0.0
    %v666 = vand.u32 %v35, 4294901760
    %667 = vmatpush1.msra.mxu0 %v666
    %668 = vmatprep.subr.mxu0 0.0
    %v669 = vand.u32 %v36, 4294901760
    %670 = vmatpush1.msra.mxu0 %v669
    %671 = vmatprep.subr.mxu0 0.0
    %v672 = vand.u32 %v37, 4294901760
    %673 = vmatpush1.msra.mxu0 %v672
    %674 = vmatprep.subr.mxu0 0.0
    %v675 = vand.u32 %v38, 4294901760
    %676 = vmatpush1.msra.mxu0 %v675
    %677 = vmatprep.subr.mxu0 0.0
    %678 = vmatpush1.msra.mxu0 0.0
    %679 = vmatprep.subr.mxu0 0.0
    %680 = vmatpush1.msra.mxu0 0.0
    %681 = vmatprep.subr.mxu0 0.0
    %682 = vmatpush1.msra.mxu0 0.0
    %683 = vmatprep.subr.mxu0 0.0
    %684 = vmatpush1.msra.mxu0 0.0
    %685 = vmatprep.subr.mxu0 0.0
    %686 = vmatpush1.msra.mxu0 0.0
    %687 = vmatprep.subr.mxu0 0.0
    %688 = vmatpush1.msra.mxu0 0.0
    %689 = vmatprep.subr.mxu0 0.0
    %690 = vmatpush1.msra.mxu0 0.0
    %691 = vmatprep.subr.mxu0 0.0
    %692 = vmatpush1.msra.mxu0 0.0
    %693 = vmatprep.subr.mxu0 0.0
    %694 = vmatpush1.msra.mxu0 0.0
    %695 = vmatprep.subr.mxu0 0.0
    %696 = vmatpush1.msra.mxu0 0.0
    %697 = vmatprep.subr.mxu0 0.0
    %698 = vmatpush1.msra.mxu0 0.0
    %699 = vmatprep.subr.mxu0 0.0
    %700 = vmatpush1.msra.mxu0 0.0
    %701 = vmatprep.subr.mxu0 0.0
    %702 = vmatpush1.msra.mxu0 0.0
    %703 = vmatprep.subr.mxu0 0.0
    %704 = vmatpush1.msra.mxu0 0.0
    %705 = vmatprep.subr.mxu0 0.0
    %706 = vmatpush1.msra.mxu0 0.0
    %707 = vmatprep.subr.mxu0 0.0
    %708 = vmatpush1.msra.mxu0 0.0
    %709 = vmatprep.subr.mxu0 0.0
    %710 = vmatpush1.msra.mxu0 0.0
    %711 = vmatprep.subr.mxu0 0.0
    %712 = vmatpush1.msra.mxu0 0.0
    %713 = vmatprep.subr.mxu0 0.0
    %714 = vmatpush1.msra.mxu0 0.0
    %715 = vmatprep.subr.mxu0 0.0
    %716 = vmatpush1.msra.mxu0 0.0
    %717 = vmatprep.subr.mxu0 0.0
    %718 = vmatpush1.msra.mxu0 0.0
    %719 = vmatprep.subr.mxu0 0.0
    %720 = vmatpush1.msra.mxu0 0.0
    %721 = vmatprep.subr.mxu0 0.0
    %722 = vmatpush1.msra.mxu0 0.0
    %723 = vmatprep.subr.mxu0 0.0
    %724 = vmatpush1.msra.mxu0 0.0
    %725 = vmatprep.mubr.f32.mxu0 0.0
    %v726 = vand.u32 %v73, 4294901760
    %727 = vmatmul.mubr.f32.gmra.mrb[0].mxu0 %v726
    %v728 = vpop.f32.mrb[0].mxu0
    %v729 = vadd.f32 %v632, %v728
    %v730 = vpop.f32.mrb[0].mxu0
    %731 = vmatprep.mubr.f32.mxu0 0.0
    %v732 = vand.u32 %v76, 4294901760
    %733 = vmatmul.mubr.f32.gmra.mrb[0].mxu0 %v732
    %v734 = vpop.f32.mrb[0].mxu0
    %v735 = vadd.f32 %v638, %v734
    %v736 = vpop.f32.mrb[0].mxu0
    %737 = vmatprep.mubr.f32.mxu0 0.0
    %v738 = vand.u32 %v79, 4294901760
    %739 = vmatmul.mubr.f32.gmra.mrb[0].mxu0 %v738
    %v740 = vpop.f32.mrb[0].mxu0
    %v741 = vadd.f32 %v644, %v740
    %v742 = vpop.f32.mrb[0].mxu0
    %743 = vmatprep.mubr.f32.mxu0 0.0
    %v744 = vand.u32 %v82, 4294901760
    %745 = vmatmul.mubr.f32.gmra.mrb[0].mxu0 %v744
    %v746 = vpop.f32.mrb[0].mxu0
    %v747 = vadd.f32 %v650, %v746
    %v748 = vpop.f32.mrb[0].mxu0
    %749 = vdwg.mxu0
    %750 = vset.pattern.permute.xlu0 1
    %751 = vperm.xlu0 %750, %v29
    %v752 = vpop.permute.xlu0 %751
    %753 = vset.pattern.permute.xlu0 1
    %754 = vperm.xlu0 %753, %v30
    %v755 = vpop.permute.xlu0 %754
    %vm756 = vcmp.eq.s32.totalorder %v46, %v752
    %vm757 = vcmp.eq.s32.totalorder %v46, %v755
    %v758 = vsel %vm756, 1, 0
    %v759 = vsel %vm757, 1, 0
    %v760 = vcvt.s32.f32 %v758
    %v761 = vcvt.s32.f32 %v759
    %vm762 = vcmask 130048
    %v764 = vsel %vm762, %v760, 0
    %v767 = vsel %vm762, %v761, 0
    %769 = vmatprep.subr.mxu0 0.0
    %v770 = vand.u32 %v39, 4294901760
    %771 = vmatpush1.msra.mxu0 %v770
    %772 = vmatprep.subr.mxu0 0.0
    %v773 = vand.u32 %v40, 4294901760
    %774 = vmatpush1.msra.mxu0 %v773
    %775 = vmatprep.subr.mxu0 0.0
    %776 = vmatpush1.msra.mxu0 0.0
    %777 = vmatprep.subr.mxu0 0.0
    %778 = vmatpush1.msra.mxu0 0.0
    %779 = vmatprep.subr.mxu0 0.0
    %780 = vmatpush1.msra.mxu0 0.0
    %781 = vmatprep.subr.mxu0 0.0
    %782 = vmatpush1.msra.mxu0 0.0
    %783 = vmatprep.subr.mxu0 0.0
    %784 = vmatpush1.msra.mxu0 0.0
    %785 = vmatprep.subr.mxu0 0.0
    %786 = vmatpush1.msra.mxu0 0.0
    %787 = vmatprep.subr.mxu0 0.0
    %788 = vmatpush1.msra.mxu0 0.0
    %789 = vmatprep.subr.mxu0 0.0
    %790 = vmatpush1.msra.mxu0 0.0
    %791 = vmatprep.subr.mxu0 0.0
    %792 = vmatpush1.msra.mxu0 0.0
    %793 = vmatprep.subr.mxu0 0.0
    %794 = vmatpush1.msra.mxu0 0.0
    %795 = vmatprep.subr.mxu0 0.0
    %796 = vmatpush1.msra.mxu0 0.0
    %797 = vmatprep.subr.mxu0 0.0
    %798 = vmatpush1.msra.mxu0 0.0
    %799 = vmatprep.subr.mxu0 0.0
    %800 = vmatpush1.msra.mxu0 0.0
    %801 = vmatprep.subr.mxu0 0.0
    %802 = vmatpush1.msra.mxu0 0.0
    %803 = vmatprep.subr.mxu0 0.0
    %804 = vmatpush1.msra.mxu0 0.0
    %805 = vmatprep.subr.mxu0 0.0
    %806 = vmatpush1.msra.mxu0 0.0
    %807 = vmatprep.subr.mxu0 0.0
    %808 = vmatpush1.msra.mxu0 0.0
    %809 = vmatprep.subr.mxu0 0.0
    %810 = vmatpush1.msra.mxu0 0.0
    %811 = vmatprep.subr.mxu0 0.0
    %812 = vmatpush1.msra.mxu0 0.0
    %813 = vmatprep.subr.mxu0 0.0
    %814 = vmatpush1.msra.mxu0 0.0
    %815 = vmatprep.subr.mxu0 0.0
    %816 = vmatpush1.msra.mxu0 0.0
    %817 = vmatprep.subr.mxu0 0.0
    %818 = vmatpush1.msra.mxu0 0.0
    %819 = vmatprep.subr.mxu0 0.0
    %820 = vmatpush1.msra.mxu0 0.0
    %821 = vmatprep.subr.mxu0 0.0
    %822 = vmatpush1.msra.mxu0 0.0
    %823 = vmatprep.subr.mxu0 0.0
    %824 = vmatpush1.msra.mxu0 0.0
    %825 = vmatprep.subr.mxu0 0.0
    %826 = vmatpush1.msra.mxu0 0.0
    %827 = vmatprep.subr.mxu0 0.0
    %828 = vmatpush1.msra.mxu0 0.0
    %829 = vmatprep.subr.mxu0 0.0
    %830 = vmatpush1.msra.mxu0 0.0
    %831 = vmatprep.subr.mxu0 0.0
    %832 = vmatpush1.msra.mxu0 0.0
    %833 = vmatprep.subr.mxu0 0.0
    %834 = vmatpush1.msra.mxu0 0.0
    %835 = vmatprep.mubr.f32.mxu0 0.0
    %v836 = vand.u32 %v764, 4294901760
    %v837 = vsub.f32 %v764, %v836
    %v838 = vand.u32 %v837, 4294901760
    %v839 = vsub.f32 %v837, %v838
    %v840 = vand.u32 %v839, 4294901760
    %841 = vmatmul.mubr.f32.gmra.mrb[0].mxu0 %v840
    %v842 = vpop.f32.mrb[0].mxu0
    %v843 = vadd.f32 0.0, %v842
    %v844 = vpop.f32.mrb[0].mxu0
    %845 = vmatprep.mubr.f32.mxu0 0.0
    %v846 = vand.u32 %v767, 4294901760
    %v847 = vsub.f32 %v767, %v846
    %v848 = vand.u32 %v847, 4294901760
    %v849 = vsub.f32 %v847, %v848
    %v850 = vand.u32 %v849, 4294901760
    %851 = vmatmul.mubr.f32.gmra.mrb[0].mxu0 %v850
    %v852 = vpop.f32.mrb[0].mxu0
    %v853 = vadd.f32 0.0, %v852
    %v854 = vpop.f32.mrb[0].mxu0
    %855 = vdwg.mxu0
    %856 = vmatprep.subr.mxu0 0.0
    %v857 = vand.u32 %v39, 4294901760
    %v858 = vsub.f32 %v39, %v857
    %v859 = vand.u32 %v858, 4294901760
    %v860 = vsub.f32 %v858, %v859
    %v861 = vand.u32 %v860, 4294901760
    %862 = vmatpush1.msra.mxu0 %v861
    %863 = vmatprep.subr.mxu0 0.0
    %v864 = vand.u32 %v40, 4294901760
    %v865 = vsub.f32 %v40, %v864
    %v866 = vand.u32 %v865, 4294901760
    %v867 = vsub.f32 %v865, %v866
    %v868 = vand.u32 %v867, 4294901760
    %869 = vmatpush1.msra.mxu0 %v868
    %870 = vmatprep.subr.mxu0 0.0
    %871 = vmatpush1.msra.mxu0 0.0
    %872 = vmatprep.subr.mxu0 0.0
    %873 = vmatpush1.msra.mxu0 0.0
    %874 = vmatprep.subr.mxu0 0.0
    %875 = vmatpush1.msra.mxu0 0.0
    %876 = vmatprep.subr.mxu0 0.0
    %877 = vmatpush1.msra.mxu0 0.0
    %878 = vmatprep.subr.mxu0 0.0
    %879 = vmatpush1.msra.mxu0 0.0
    %880 = vmatprep.subr.mxu0 0.0
    %881 = vmatpush1.msra.mxu0 0.0
    %882 = vmatprep.subr.mxu0 0.0
    %883 = vmatpush1.msra.mxu0 0.0
    %884 = vmatprep.subr.mxu0 0.0
    %885 = vmatpush1.msra.mxu0 0.0
    %886 = vmatprep.subr.mxu0 0.0
    %887 = vmatpush1.msra.mxu0 0.0
    %888 = vmatprep.subr.mxu0 0.0
    %889 = vmatpush1.msra.mxu0 0.0
    %890 = vmatprep.subr.mxu0 0.0
    %891 = vmatpush1.msra.mxu0 0.0
    %892 = vmatprep.subr.mxu0 0.0
    %893 = vmatpush1.msra.mxu0 0.0
    %894 = vmatprep.subr.mxu0 0.0
    %895 = vmatpush1.msra.mxu0 0.0
    %896 = vmatprep.subr.mxu0 0.0
    %897 = vmatpush1.msra.mxu0 0.0
    %898 = vmatprep.subr.mxu0 0.0
    %899 = vmatpush1.msra.mxu0 0.0
    %900 = vmatprep.subr.mxu0 0.0
    %901 = vmatpush1.msra.mxu0 0.0
    %902 = vmatprep.subr.mxu0 0.0
    %903 = vmatpush1.msra.mxu0 0.0
    %904 = vmatprep.subr.mxu0 0.0
    %905 = vmatpush1.msra.mxu0 0.0
    %906 = vmatprep.subr.mxu0 0.0
    %907 = vmatpush1.msra.mxu0 0.0
    %908 = vmatprep.subr.mxu0 0.0
    %909 = vmatpush1.msra.mxu0 0.0
    %910 = vmatprep.subr.mxu0 0.0
    %911 = vmatpush1.msra.mxu0 0.0
    %912 = vmatprep.subr.mxu0 0.0
    %913 = vmatpush1.msra.mxu0 0.0
    %914 = vmatprep.subr.mxu0 0.0
    %915 = vmatpush1.msra.mxu0 0.0
    %916 = vmatprep.subr.mxu0 0.0
    %917 = vmatpush1.msra.mxu0 0.0
    %918 = vmatprep.subr.mxu0 0.0
    %919 = vmatpush1.msra.mxu0 0.0
    %920 = vmatprep.subr.mxu0 0.0
    %921 = vmatpush1.msra.mxu0 0.0
    %922 = vmatprep.subr.mxu0 0.0
    %923 = vmatpush1.msra.mxu0 0.0
    %924 = vmatprep.subr.mxu0 0.0
    %925 = vmatpush1.msra.mxu0 0.0
    %926 = vmatprep.subr.mxu0 0.0
    %927 = vmatpush1.msra.mxu0 0.0
    %928 = vmatprep.subr.mxu0 0.0
    %929 = vmatpush1.msra.mxu0 0.0
    %930 = vmatprep.mubr.f32.mxu0 0.0
    %v931 = vand.u32 %v764, 4294901760
    %932 = vmatmul.mubr.f32.gmra.mrb[0].mxu0 %v931
    %v933 = vpop.f32.mrb[0].mxu0
    %v934 = vadd.f32 %v843, %v933
    %v935 = vpop.f32.mrb[0].mxu0
    %936 = vmatprep.mubr.f32.mxu0 0.0
    %v937 = vand.u32 %v767, 4294901760
    %938 = vmatmul.mubr.f32.gmra.mrb[0].mxu0 %v937
    %v939 = vpop.f32.mrb[0].mxu0
    %v940 = vadd.f32 %v853, %v939
    %v941 = vpop.f32.mrb[0].mxu0
    %942 = vdwg.mxu0
    %943 = vmatprep.subr.mxu0 0.0
    %v944 = vand.u32 %v39, 4294901760
    %v945 = vsub.f32 %v39, %v944
    %946 = vmatpush1.msra.mxu0 %v945
    %947 = vmatprep.subr.mxu0 0.0
    %v948 = vand.u32 %v40, 4294901760
    %v949 = vsub.f32 %v40, %v948
    %950 = vmatpush1.msra.mxu0 %v949
    %951 = vmatprep.subr.mxu0 0.0
    %952 = vmatpush1.msra.mxu0 0.0
    %953 = vmatprep.subr.mxu0 0.0
    %954 = vmatpush1.msra.mxu0 0.0
    %955 = vmatprep.subr.mxu0 0.0
    %956 = vmatpush1.msra.mxu0 0.0
    %957 = vmatprep.subr.mxu0 0.0
    %958 = vmatpush1.msra.mxu0 0.0
    %959 = vmatprep.subr.mxu0 0.0
    %960 = vmatpush1.msra.mxu0 0.0
    %961 = vmatprep.subr.mxu0 0.0
    %962 = vmatpush1.msra.mxu0 0.0
    %963 = vmatprep.subr.mxu0 0.0
    %964 = vmatpush1.msra.mxu0 0.0
    %965 = vmatprep.subr.mxu0 0.0
    %966 = vmatpush1.msra.mxu0 0.0
    %967 = vmatprep.subr.mxu0 0.0
    %968 = vmatpush1.msra.mxu0 0.0
    %969 = vmatprep.subr.mxu0 0.0
    %970 = vmatpush1.msra.mxu0 0.0
    %971 = vmatprep.subr.mxu0 0.0
    %972 = vmatpush1.msra.mxu0 0.0
    %973 = vmatprep.subr.mxu0 0.0
    %974 = vmatpush1.msra.mxu0 0.0
    %975 = vmatprep.subr.mxu0 0.0
    %976 = vmatpush1.msra.mxu0 0.0
    %977 = vmatprep.subr.mxu0 0.0
    %978 = vmatpush1.msra.mxu0 0.0
    %979 = vmatprep.subr.mxu0 0.0
    %980 = vmatpush1.msra.mxu0 0.0
    %981 = vmatprep.subr.mxu0 0.0
    %982 = vmatpush1.msra.mxu0 0.0
    %983 = vmatprep.subr.mxu0 0.0
    %984 = vmatpush1.msra.mxu0 0.0
    %985 = vmatprep.subr.mxu0 0.0
    %986 = vmatpush1.msra.mxu0 0.0
    %987 = vmatprep.subr.mxu0 0.0
    %988 = vmatpush1.msra.mxu0 0.0
    %989 = vmatprep.subr.mxu0 0.0
    %990 = vmatpush1.msra.mxu0 0.0
    %991 = vmatprep.subr.mxu0 0.0
    %992 = vmatpush1.msra.mxu0 0.0
    %993 = vmatprep.subr.mxu0 0.0
    %994 = vmatpush1.msra.mxu0 0.0
    %995 = vmatprep.subr.mxu0 0.0
    %996 = vmatpush1.msra.mxu0 0.0
    %997 = vmatprep.subr.mxu0 0.0
    %998 = vmatpush1.msra.mxu0 0.0
    %999 = vmatprep.subr.mxu0 0.0
    %1000 = vmatpush1.msra.mxu0 0.0
    %1001 = vmatprep.subr.mxu0 0.0
    %1002 = vmatpush1.msra.mxu0 0.0
    %1003 = vmatprep.subr.mxu0 0.0
    %1004 = vmatpush1.msra.mxu0 0.0
    %1005 = vmatprep.subr.mxu0 0.0
    %1006 = vmatpush1.msra.mxu0 0.0
    %1007 = vmatprep.subr.mxu0 0.0
    %1008 = vmatpush1.msra.mxu0 0.0
    %1009 = vmatprep.subr.mxu0 0.0
    %1010 = vmatpush1.msra.mxu0 0.0
    %1011 = vmatprep.mubr.f32.mxu0 0.0
    %v1012 = vand.u32 %v764, 4294901760
    %v1013 = vsub.f32 %v764, %v1012
    %1014 = vmatmul.mubr.f32.gmra.mrb[0].mxu0 %v1013
    %v1015 = vpop.f32.mrb[0].mxu0
    %v1016 = vadd.f32 %v934, %v1015
    %v1017 = vpop.f32.mrb[0].mxu0
    %1018 = vmatprep.mubr.f32.mxu0 0.0
    %v1019 = vand.u32 %v767, 4294901760
    %v1020 = vsub.f32 %v767, %v1019
    %1021 = vmatmul.mubr.f32.gmra.mrb[0].mxu0 %v1020
    %v1022 = vpop.f32.mrb[0].mxu0
    %v1023 = vadd.f32 %v940, %v1022
    %v1024 = vpop.f32.mrb[0].mxu0
    %1025 = vdwg.mxu0
    %1026 = vmatprep.subr.mxu0 0.0
    %v1027 = vand.u32 %v39, 4294901760
    %1028 = vmatpush1.msra.mxu0 %v1027
    %1029 = vmatprep.subr.mxu0 0.0
    %v1030 = vand.u32 %v40, 4294901760
    %1031 = vmatpush1.msra.mxu0 %v1030
    %1032 = vmatprep.subr.mxu0 0.0
    %1033 = vmatpush1.msra.mxu0 0.0
    %1034 = vmatprep.subr.mxu0 0.0
    %1035 = vmatpush1.msra.mxu0 0.0
    %1036 = vmatprep.subr.mxu0 0.0
    %1037 = vmatpush1.msra.mxu0 0.0
    %1038 = vmatprep.subr.mxu0 0.0
    %1039 = vmatpush1.msra.mxu0 0.0
    %1040 = vmatprep.subr.mxu0 0.0
    %1041 = vmatpush1.msra.mxu0 0.0
    %1042 = vmatprep.subr.mxu0 0.0
    %1043 = vmatpush1.msra.mxu0 0.0
    %1044 = vmatprep.subr.mxu0 0.0
    %1045 = vmatpush1.msra.mxu0 0.0
    %1046 = vmatprep.subr.mxu0 0.0
    %1047 = vmatpush1.msra.mxu0 0.0
    %1048 = vmatprep.subr.mxu0 0.0
    %1049 = vmatpush1.msra.mxu0 0.0
    %1050 = vmatprep.subr.mxu0 0.0
    %1051 = vmatpush1.msra.mxu0 0.0
    %1052 = vmatprep.subr.mxu0 0.0
    %1053 = vmatpush1.msra.mxu0 0.0
    %1054 = vmatprep.subr.mxu0 0.0
    %1055 = vmatpush1.msra.mxu0 0.0
    %1056 = vmatprep.subr.mxu0 0.0
    %1057 = vmatpush1.msra.mxu0 0.0
    %1058 = vmatprep.subr.mxu0 0.0
    %1059 = vmatpush1.msra.mxu0 0.0
    %1060 = vmatprep.subr.mxu0 0.0
    %1061 = vmatpush1.msra.mxu0 0.0
    %1062 = vmatprep.subr.mxu0 0.0
    %1063 = vmatpush1.msra.mxu0 0.0
    %1064 = vmatprep.subr.mxu0 0.0
    %1065 = vmatpush1.msra.mxu0 0.0
    %1066 = vmatprep.subr.mxu0 0.0
    %1067 = vmatpush1.msra.mxu0 0.0
    %1068 = vmatprep.subr.mxu0 0.0
    %1069 = vmatpush1.msra.mxu0 0.0
    %1070 = vmatprep.subr.mxu0 0.0
    %1071 = vmatpush1.msra.mxu0 0.0
    %1072 = vmatprep.subr.mxu0 0.0
    %1073 = vmatpush1.msra.mxu0 0.0
    %1074 = vmatprep.subr.mxu0 0.0
    %1075 = vmatpush1.msra.mxu0 0.0
    %1076 = vmatprep.subr.mxu0 0.0
    %1077 = vmatpush1.msra.mxu0 0.0
    %1078 = vmatprep.subr.mxu0 0.0
    %1079 = vmatpush1.msra.mxu0 0.0
    %1080 = vmatprep.subr.mxu0 0.0
    %1081 = vmatpush1.msra.mxu0 0.0
    %1082 = vmatprep.subr.mxu0 0.0
    %1083 = vmatpush1.msra.mxu0 0.0
    %1084 = vmatprep.subr.mxu0 0.0
    %1085 = vmatpush1.msra.mxu0 0.0
    %1086 = vmatprep.subr.mxu0 0.0
    %1087 = vmatpush1.msra.mxu0 0.0
    %1088 = vmatprep.subr.mxu0 0.0
    %1089 = vmatpush1.msra.mxu0 0.0
    %1090 = vmatprep.subr.mxu0 0.0
    %1091 = vmatpush1.msra.mxu0 0.0
    %1092 = vmatprep.mubr.f32.mxu0 0.0
    %v1093 = vand.u32 %v764, 4294901760
    %v1094 = vsub.f32 %v764, %v1093
    %v1095 = vand.u32 %v1094, 4294901760
    %1096 = vmatmul.mubr.f32.gmra.mrb[0].mxu0 %v1095
    %v1097 = vpop.f32.mrb[0].mxu0
    %v1098 = vadd.f32 %v1016, %v1097
    %v1099 = vpop.f32.mrb[0].mxu0
    %1100 = vmatprep.mubr.f32.mxu0 0.0
    %v1101 = vand.u32 %v767, 4294901760
    %v1102 = vsub.f32 %v767, %v1101
    %v1103 = vand.u32 %v1102, 4294901760
    %1104 = vmatmul.mubr.f32.gmra.mrb[0].mxu0 %v1103
    %v1105 = vpop.f32.mrb[0].mxu0
    %v1106 = vadd.f32 %v1023, %v1105
    %v1107 = vpop.f32.mrb[0].mxu0
    %1108 = vdwg.mxu0
    %1109 = vmatprep.subr.mxu0 0.0
    %v1110 = vand.u32 %v39, 4294901760
    %v1111 = vsub.f32 %v39, %v1110
    %v1112 = vand.u32 %v1111, 4294901760
    %1113 = vmatpush1.msra.mxu0 %v1112
    %1114 = vmatprep.subr.mxu0 0.0
    %v1115 = vand.u32 %v40, 4294901760
    %v1116 = vsub.f32 %v40, %v1115
    %v1117 = vand.u32 %v1116, 4294901760
    %1118 = vmatpush1.msra.mxu0 %v1117
    %1119 = vmatprep.subr.mxu0 0.0
    %1120 = vmatpush1.msra.mxu0 0.0
    %1121 = vmatprep.subr.mxu0 0.0
    %1122 = vmatpush1.msra.mxu0 0.0
    %1123 = vmatprep.subr.mxu0 0.0
    %1124 = vmatpush1.msra.mxu0 0.0
    %1125 = vmatprep.subr.mxu0 0.0
    %1126 = vmatpush1.msra.mxu0 0.0
    %1127 = vmatprep.subr.mxu0 0.0
    %1128 = vmatpush1.msra.mxu0 0.0
    %1129 = vmatprep.subr.mxu0 0.0
    %1130 = vmatpush1.msra.mxu0 0.0
    %1131 = vmatprep.subr.mxu0 0.0
    %1132 = vmatpush1.msra.mxu0 0.0
    %1133 = vmatprep.subr.mxu0 0.0
    %1134 = vmatpush1.msra.mxu0 0.0
    %1135 = vmatprep.subr.mxu0 0.0
    %1136 = vmatpush1.msra.mxu0 0.0
    %1137 = vmatprep.subr.mxu0 0.0
    %1138 = vmatpush1.msra.mxu0 0.0
    %1139 = vmatprep.subr.mxu0 0.0
    %1140 = vmatpush1.msra.mxu0 0.0
    %1141 = vmatprep.subr.mxu0 0.0
    %1142 = vmatpush1.msra.mxu0 0.0
    %1143 = vmatprep.subr.mxu0 0.0
    %1144 = vmatpush1.msra.mxu0 0.0
    %1145 = vmatprep.subr.mxu0 0.0
    %1146 = vmatpush1.msra.mxu0 0.0
    %1147 = vmatprep.subr.mxu0 0.0
    %1148 = vmatpush1.msra.mxu0 0.0
    %1149 = vmatprep.subr.mxu0 0.0
    %1150 = vmatpush1.msra.mxu0 0.0
    %1151 = vmatprep.subr.mxu0 0.0
    %1152 = vmatpush1.msra.mxu0 0.0
    %1153 = vmatprep.subr.mxu0 0.0
    %1154 = vmatpush1.msra.mxu0 0.0
    %1155 = vmatprep.subr.mxu0 0.0
    %1156 = vmatpush1.msra.mxu0 0.0
    %1157 = vmatprep.subr.mxu0 0.0
    %1158 = vmatpush1.msra.mxu0 0.0
    %1159 = vmatprep.subr.mxu0 0.0
    %1160 = vmatpush1.msra.mxu0 0.0
    %1161 = vmatprep.subr.mxu0 0.0
    %1162 = vmatpush1.msra.mxu0 0.0
    %1163 = vmatprep.subr.mxu0 0.0
    %1164 = vmatpush1.msra.mxu0 0.0
    %1165 = vmatprep.subr.mxu0 0.0
    %1166 = vmatpush1.msra.mxu0 0.0
    %1167 = vmatprep.subr.mxu0 0.0
    %1168 = vmatpush1.msra.mxu0 0.0
    %1169 = vmatprep.subr.mxu0 0.0
    %1170 = vmatpush1.msra.mxu0 0.0
    %1171 = vmatprep.subr.mxu0 0.0
    %1172 = vmatpush1.msra.mxu0 0.0
    %1173 = vmatprep.subr.mxu0 0.0
    %1174 = vmatpush1.msra.mxu0 0.0
    %1175 = vmatprep.subr.mxu0 0.0
    %1176 = vmatpush1.msra.mxu0 0.0
    %1177 = vmatprep.subr.mxu0 0.0
    %1178 = vmatpush1.msra.mxu0 0.0
    %1179 = vmatprep.mubr.f32.mxu0 0.0
    %v1180 = vand.u32 %v764, 4294901760
    %1181 = vmatmul.mubr.f32.gmra.mrb[0].mxu0 %v1180
    %v1182 = vpop.f32.mrb[0].mxu0
    %v1183 = vadd.f32 %v1098, %v1182
    %v1184 = vpop.f32.mrb[0].mxu0
    %1185 = vmatprep.mubr.f32.mxu0 0.0
    %v1186 = vand.u32 %v767, 4294901760
    %1187 = vmatmul.mubr.f32.gmra.mrb[0].mxu0 %v1186
    %v1188 = vpop.f32.mrb[0].mxu0
    %v1189 = vadd.f32 %v1106, %v1188
    %v1190 = vpop.f32.mrb[0].mxu0
    %1191 = vdwg.mxu0
    %1192 = vmatprep.subr.mxu0 0.0
    %v1193 = vand.u32 %v39, 4294901760
    %1194 = vmatpush1.msra.mxu0 %v1193
    %1195 = vmatprep.subr.mxu0 0.0
    %v1196 = vand.u32 %v40, 4294901760
    %1197 = vmatpush1.msra.mxu0 %v1196
    %1198 = vmatprep.subr.mxu0 0.0
    %1199 = vmatpush1.msra.mxu0 0.0
    %1200 = vmatprep.subr.mxu0 0.0
    %1201 = vmatpush1.msra.mxu0 0.0
    %1202 = vmatprep.subr.mxu0 0.0
    %1203 = vmatpush1.msra.mxu0 0.0
    %1204 = vmatprep.subr.mxu0 0.0
    %1205 = vmatpush1.msra.mxu0 0.0
    %1206 = vmatprep.subr.mxu0 0.0
    %1207 = vmatpush1.msra.mxu0 0.0
    %1208 = vmatprep.subr.mxu0 0.0
    %1209 = vmatpush1.msra.mxu0 0.0
    %1210 = vmatprep.subr.mxu0 0.0
    %1211 = vmatpush1.msra.mxu0 0.0
    %1212 = vmatprep.subr.mxu0 0.0
    %1213 = vmatpush1.msra.mxu0 0.0
    %1214 = vmatprep.subr.mxu0 0.0
    %1215 = vmatpush1.msra.mxu0 0.0
    %1216 = vmatprep.subr.mxu0 0.0
    %1217 = vmatpush1.msra.mxu0 0.0
    %1218 = vmatprep.subr.mxu0 0.0
    %1219 = vmatpush1.msra.mxu0 0.0
    %1220 = vmatprep.subr.mxu0 0.0
    %1221 = vmatpush1.msra.mxu0 0.0
    %1222 = vmatprep.subr.mxu0 0.0
    %1223 = vmatpush1.msra.mxu0 0.0
    %1224 = vmatprep.subr.mxu0 0.0
    %1225 = vmatpush1.msra.mxu0 0.0
    %1226 = vmatprep.subr.mxu0 0.0
    %1227 = vmatpush1.msra.mxu0 0.0
    %1228 = vmatprep.subr.mxu0 0.0
    %1229 = vmatpush1.msra.mxu0 0.0
    %1230 = vmatprep.subr.mxu0 0.0
    %1231 = vmatpush1.msra.mxu0 0.0
    %1232 = vmatprep.subr.mxu0 0.0
    %1233 = vmatpush1.msra.mxu0 0.0
    %1234 = vmatprep.subr.mxu0 0.0
    %1235 = vmatpush1.msra.mxu0 0.0
    %1236 = vmatprep.subr.mxu0 0.0
    %1237 = vmatpush1.msra.mxu0 0.0
    %1238 = vmatprep.subr.mxu0 0.0
    %1239 = vmatpush1.msra.mxu0 0.0
    %1240 = vmatprep.subr.mxu0 0.0
    %1241 = vmatpush1.msra.mxu0 0.0
    %1242 = vmatprep.subr.mxu0 0.0
    %1243 = vmatpush1.msra.mxu0 0.0
    %1244 = vmatprep.subr.mxu0 0.0
    %1245 = vmatpush1.msra.mxu0 0.0
    %1246 = vmatprep.subr.mxu0 0.0
    %1247 = vmatpush1.msra.mxu0 0.0
    %1248 = vmatprep.subr.mxu0 0.0
    %1249 = vmatpush1.msra.mxu0 0.0
    %1250 = vmatprep.subr.mxu0 0.0
    %1251 = vmatpush1.msra.mxu0 0.0
    %1252 = vmatprep.subr.mxu0 0.0
    %1253 = vmatpush1.msra.mxu0 0.0
    %1254 = vmatprep.subr.mxu0 0.0
    %1255 = vmatpush1.msra.mxu0 0.0
    %1256 = vmatprep.subr.mxu0 0.0
    %1257 = vmatpush1.msra.mxu0 0.0
    %1258 = vmatprep.mubr.f32.mxu0 0.0
    %v1259 = vand.u32 %v764, 4294901760
    %1260 = vmatmul.mubr.f32.gmra.mrb[0].mxu0 %v1259
    %v1261 = vpop.f32.mrb[0].mxu0
    %v1262 = vadd.f32 %v1183, %v1261
    %v1263 = vpop.f32.mrb[0].mxu0
    %1264 = vmatprep.mubr.f32.mxu0 0.0
    %v1265 = vand.u32 %v767, 4294901760
    %1266 = vmatmul.mubr.f32.gmra.mrb[0].mxu0 %v1265
    %v1267 = vpop.f32.mrb[0].mxu0
    %v1268 = vadd.f32 %v1189, %v1267
    %v1269 = vpop.f32.mrb[0].mxu0
    %1270 = vdwg.mxu0
    %1271 = vst [vmem:[#allocation5] sm:$0xff] %v729
    %1272 = vst [vmem:[#allocation5 + $0x18] sm:$0xff] %v735
    %1273 = vst [vmem:[#allocation5 + $0x8] sm:$0xff] %v1262
    %1274 = vst [vmem:[#allocation5 + $0x20] sm:$0xff] %v1268
    %1275 = vst [vmem:[#allocation5 + $0x10] sm:$0xff] %v741
    %1276 = vst [vmem:[#allocation5 + $0x28] sm:$0xff] %v747
    // Predicated region
    $region18: #{tpu_custom_call.1} parent=1 // pred_check
      _
    $region19: #{tpu_custom_call.1} parent=1 // pred_check_branch
      %1278 = sbr.rel (0) target = $region21
    $region20: #{tpu_custom_call.1} parent=1 // pred_region
      %s1280 = ssub.s32 768, 768
      %1281 = vsyncadd [#allocation4], %s1280
      %s1282 = sshll.u32 [#allocation5], 4
      %s1283 = int_to_ptr.vmem [resolvable:$true] %s1282
      %1288 = dma.vmem_to_hbm [thread:$0]  %s1283, 768, %s3, [#allocation4], 384, 384, 24
    $region21: #{tpu_custom_call.1} parent=1 // pred_fallthru
      _
    // Predicated region
    $region22: #{tpu_custom_call.1} parent=1 // pred_check
      _
    $region23: #{tpu_custom_call.1} parent=1 // pred_check_branch
      %1290 = sbr.rel (0) target = $region25
    $region24: #{tpu_custom_call.1} parent=1 // pred_region
      %1291 = dma.done [#allocation4], 768
    $region25: #{tpu_custom_call.1} parent=1 // pred_fallthru
      _
    %1292 = vsyncpa [#allocation3], 1
    %1293 = vsyncpa [#allocation4], 1

// kernel: tpu_custom_call.1
$region0: #{tpu_custom_call.1}
  #allocation0 [shape = 'u32[]', space=smem, size = 0x4, offset = 0x4, fixed_abs, tag = 'smem constant byte address 0x4 - core index']
  #allocation1 [shape = 'u32[144,128]{1,0:T(1,128)}', space=vmem, size = 0x12000, scoped, tag = 'internal scratch']
  %s0 = inlined_call_operand.vmem [shape: s32[16,3], index: 0, kind: input, shape index: {}]
  %s1 = inlined_call_operand.hbm [shape: f32[64,128], index: 1, kind: input, shape index: {}]
  %s2 = inlined_call_operand.vmem [shape: f32[16,128], index: 2, kind: input, shape index: {}]
  %s3 = inlined_call_operand.hbm [shape: f32[16,384], index: 3, kind: output, shape index: {}]
  %s4 = sld [smem:[#allocation0]]
  $region26: #{tpu_custom_call.1} parent=0
    _
  %s6 = ssub.s32 1, %s4
  %s7 = scalar_select 0, %s6, %s4
  $region1: #{tpu_custom_call.1} parent=0
    #allocation2 [shape = 'u8[32768]{0}', space=vmem, size = 0x8000, scoped, tag = 'input window, operand 1, single buffered']
    #allocation3 [shape = 's32[1]{0}', space=sflag, size = 0x4, scoped, tag = 'scoped memory for tpu_custom_call.1']
    #allocation4 [shape = 's32[1]{0}', space=sflag, size = 0x4, scoped, tag = 'scoped memory for tpu_custom_call.1']
    #allocation5 [shape = 'u8[24576]{0}', space=vmem, size = 0x6000, scoped, tag = 'output window, operand 0, single buffered']
    %8 = vsyncpa [#allocation3], 0
    %9 = vsyncpa [#allocation4], 0
    // Predicated region
    $region2: #{tpu_custom_call.1} parent=1 // pred_check
      _
    $region3: #{tpu_custom_call.1} parent=1 // pred_check_branch
      %11 = sbr.rel (0) target = $region5
    $region4: #{tpu_custom_call.1} parent=1 // pred_region
      _
    $region5: #{tpu_custom_call.1} parent=1 // pred_fallthru
      _
    // Predicated region
    $region6: #{tpu_custom_call.1} parent=1 // pred_check
      _
    $region7: #{tpu_custom_call.1} parent=1 // pred_check_branch
      %13 = sbr.rel (0) target = $region9
    $region8: #{tpu_custom_call.1} parent=1 // pred_region
      %s15 = ssub.s32 1024, 1024
      %16 = vsyncadd [#allocation3], %s15
      %s17 = sshll.u32 [#allocation2], 4
      %s18 = int_to_ptr.vmem [resolvable:$true] %s17
      %23 = dma.hbm_to_vmem [thread:$0]  %s1, 1024, %s18, [#allocation3], 128, 128, 8
    $region9: #{tpu_custom_call.1} parent=1 // pred_fallthru
      _
    // Predicated region
    $region10: #{tpu_custom_call.1} parent=1 // pred_check
      _
    $region11: #{tpu_custom_call.1} parent=1 // pred_check_branch
      %25 = sbr.rel (0) target = $region13
    $region12: #{tpu_custom_call.1} parent=1 // pred_region
      _
    $region13: #{tpu_custom_call.1} parent=1 // pred_fallthru
      _
    // Predicated region
    $region14: #{tpu_custom_call.1} parent=1 // pred_check
      _
    $region15: #{tpu_custom_call.1} parent=1 // pred_check_branch
      %27 = sbr.rel (0) target = $region17
    $region16: #{tpu_custom_call.1} parent=1 // pred_region
      %28 = dma.done [#allocation3], 1024
    $region17: #{tpu_custom_call.1} parent=1 // pred_fallthru
      _
    %v29 = vld [vmem:[%s0] sm:$0xff]
    %v30 = vld [vmem:[%s0 + $0x8] sm:$0xff]
    %v31 = vld [vmem:[#allocation2] sm:$0xff]
    %v32 = vld [vmem:[#allocation2 + $0x8] sm:$0xff]
    %v33 = vld [vmem:[#allocation2 + $0x10] sm:$0xff]
    %v34 = vld [vmem:[#allocation2 + $0x18] sm:$0xff]
    %v35 = vld [vmem:[#allocation2 + $0x20] sm:$0xff]
    %v36 = vld [vmem:[#allocation2 + $0x28] sm:$0xff]
    %v37 = vld [vmem:[#allocation2 + $0x30] sm:$0xff]
    %v38 = vld [vmem:[#allocation2 + $0x38] sm:$0xff]
    %v39 = vld [vmem:[%s2] sm:$0xff]
    %v40 = vld [vmem:[%s2 + $0x8] sm:$0xff]
    %41 = vrot.lane.b32.xlu0 %v29, 126
    %v42 = vpop.permute.xlu0 %41
    %43 = vrot.lane.b32.xlu0 %v30, 126
    %v44 = vpop.permute.xlu0 %43
    %v45 = vlaneseq
    %v46 = vand.u32 %v45, 127
    %47 = vset.pattern.permute.xlu0 0
    %48 = vperm.xlu0 %47, %v29
    %v49 = vpop.permute.xlu0 %48
    %50 = vset.pattern.permute.xlu0 0
    %51 = vperm.xlu0 %50, %v30
    %v52 = vpop.permute.xlu0 %51
    %53 = vset.pattern.permute.xlu0 0
    %54 = vperm.xlu0 %53, %v42
    %v55 = vpop.permute.xlu0 %54
    %56 = vset.pattern.permute.xlu0 0
    %57 = vperm.xlu0 %56, %v44
    %v58 = vpop.permute.xlu0 %57
    %vm59 = vcmp.eq.s32.totalorder %v46, %v49
    %vm60 = vcmp.eq.s32.totalorder %v46, %v52
    %vm61 = vcmp.eq.s32.totalorder %v46, %v55
    %vm62 = vcmp.eq.s32.totalorder %v46, %v58
    %v63 = vsel %vm59, 1, 0
    %v64 = vsel %vm60, 1, 0
    %v65 = vsel %vm61, 1, 0
    %v66 = vsel %vm62, 1, 0
    %v67 = vcvt.s32.f32 %v63
    %v68 = vcvt.s32.f32 %v64
    %v69 = vcvt.s32.f32 %v65
    %v70 = vcvt.s32.f32 %v66
    %vm71 = vcmask 523264
    %v73 = vsel %vm71, %v67, 0
    %v76 = vsel %vm71, %v68, 0
    %v79 = vsel %vm71, %v69, 0
    %v82 = vsel %vm71, %v70, 0
    %84 = vmatprep.subr.mxu0 0.0
    %85 = vmatpush1.msra.mxu0 %v31
    %86 = vmatprep.subr.mxu0 0.0
    %87 = vmatpush1.msra.mxu0 %v32
    %88 = vmatprep.subr.mxu0 0.0
    %89 = vmatpush1.msra.mxu0 %v33
    %90 = vmatprep.subr.mxu0 0.0
    %91 = vmatpush1.msra.mxu0 %v34
    %92 = vmatprep.subr.mxu0 0.0
    %93 = vmatpush1.msra.mxu0 %v35
    %94 = vmatprep.subr.mxu0 0.0
    %95 = vmatpush1.msra.mxu0 %v36
    %96 = vmatprep.subr.mxu0 0.0
    %97 = vmatpush1.msra.mxu0 %v37
    %98 = vmatprep.subr.mxu0 0.0
    %99 = vmatpush1.msra.mxu0 %v38
    %100 = vmatprep.subr.mxu0 0.0
    %101 = vmatpush1.msra.mxu0 0.0
    %102 = vmatprep.subr.mxu0 0.0
    %103 = vmatpush1.msra.mxu0 0.0
    %104 = vmatprep.subr.mxu0 0.0
    %105 = vmatpush1.msra.mxu0 0.0
    %106 = vmatprep.subr.mxu0 0.0
    %107 = vmatpush1.msra.mxu0 0.0
    %108 = vmatprep.subr.mxu0 0.0
    %109 = vmatpush1.msra.mxu0 0.0
    %110 = vmatprep.subr.mxu0 0.0
    %111 = vmatpush1.msra.mxu0 0.0
    %112 = vmatprep.subr.mxu0 0.0
    %113 = vmatpush1.msra.mxu0 0.0
    %114 = vmatprep.subr.mxu0 0.0
    %115 = vmatpush1.msra.mxu0 0.0
    %116 = vmatprep.subr.mxu0 0.0
    %117 = vmatpush1.msra.mxu0 0.0
    %118 = vmatprep.subr.mxu0 0.0
    %119 = vmatpush1.msra.mxu0 0.0
    %120 = vmatprep.subr.mxu0 0.0
    %121 = vmatpush1.msra.mxu0 0.0
    %122 = vmatprep.subr.mxu0 0.0
    %123 = vmatpush1.msra.mxu0 0.0
    %124 = vmatprep.subr.mxu0 0.0
    %125 = vmatpush1.msra.mxu0 0.0
    %126 = vmatprep.subr.mxu0 0.0
    %127 = vmatpush1.msra.mxu0 0.0
    %128 = vmatprep.subr.mxu0 0.0
    %129 = vmatpush1.msra.mxu0 0.0
    %130 = vmatprep.subr.mxu0 0.0
    %131 = vmatpush1.msra.mxu0 0.0
    %132 = vmatprep.subr.mxu0 0.0
    %133 = vmatpush1.msra.mxu0 0.0
    %134 = vmatprep.subr.mxu0 0.0
    %135 = vmatpush1.msra.mxu0 0.0
    %136 = vmatprep.subr.mxu0 0.0
    %137 = vmatpush1.msra.mxu0 0.0
    %138 = vmatprep.subr.mxu0 0.0
    %139 = vmatpush1.msra.mxu0 0.0
    %140 = vmatprep.subr.mxu0 0.0
    %141 = vmatpush1.msra.mxu0 0.0
    %142 = vmatprep.subr.mxu0 0.0
    %143 = vmatpush1.msra.mxu0 0.0
    %144 = vmatprep.subr.mxu0 0.0
    %145 = vmatpush1.msra.mxu0 0.0
    %146 = vmatprep.subr.mxu0 0.0
    %147 = vmatpush1.msra.mxu0 0.0
    %148 = vmatprep.mubr.f32.mxu0 0.0
    %149 = vmatmul.mubr.f32.gmra.mrb[0].mxu0 %v73
    %v150 = vpop.f32.mrb[0].mxu0
    %v151 = vadd.f32 0.0, %v150
    %v152 = vpop.f32.mrb[0].mxu0
    %153 = vmatprep.mubr.f32.mxu0 0.0
    %154 = vmatmul.mubr.f32.gmra.mrb[0].mxu0 %v76
    %v155 = vpop.f32.mrb[0].mxu0
    %v156 = vadd.f32 0.0, %v155
    %v157 = vpop.f32.mrb[0].mxu0
    %158 = vmatprep.mubr.f32.mxu0 0.0
    %159 = vmatmul.mubr.f32.gmra.mrb[0].mxu0 %v79
    %v160 = vpop.f32.mrb[0].mxu0
    %v161 = vadd.f32 0.0, %v160
    %v162 = vpop.f32.mrb[0].mxu0
    %163 = vmatprep.mubr.f32.mxu0 0.0
    %164 = vmatmul.mubr.f32.gmra.mrb[0].mxu0 %v82
    %v165 = vpop.f32.mrb[0].mxu0
    %v166 = vadd.f32 0.0, %v165
    %v167 = vpop.f32.mrb[0].mxu0
    %168 = vdwg.mxu0
    %169 = vset.pattern.permute.xlu0 1
    %170 = vperm.xlu0 %169, %v29
    %v171 = vpop.permute.xlu0 %170
    %172 = vset.pattern.permute.xlu0 1
    %173 = vperm.xlu0 %172, %v30
    %v174 = vpop.permute.xlu0 %173
    %vm175 = vcmp.eq.s32.totalorder %v46, %v171
    %vm176 = vcmp.eq.s32.totalorder %v46, %v174
    %v177 = vsel %vm175, 1, 0
    %v178 = vsel %vm176, 1, 0
    %v179 = vcvt.s32.f32 %v177
    %v180 = vcvt.s32.f32 %v178
    %vm181 = vcmask 130048
    %v183 = vsel %vm181, %v179, 0
    %v186 = vsel %vm181, %v180, 0
    %188 = vmatprep.subr.mxu0 0.0
    %189 = vmatpush1.msra.mxu0 %v39
    %190 = vmatprep.subr.mxu0 0.0
    %191 = vmatpush1.msra.mxu0 %v40
    %192 = vmatprep.subr.mxu0 0.0
    %193 = vmatpush1.msra.mxu0 0.0
    %194 = vmatprep.subr.mxu0 0.0
    %195 = vmatpush1.msra.mxu0 0.0
    %196 = vmatprep.subr.mxu0 0.0
    %197 = vmatpush1.msra.mxu0 0.0
    %198 = vmatprep.subr.mxu0 0.0
    %199 = vmatpush1.msra.mxu0 0.0
    %200 = vmatprep.subr.mxu0 0.0
    %201 = vmatpush1.msra.mxu0 0.0
    %202 = vmatprep.subr.mxu0 0.0
    %203 = vmatpush1.msra.mxu0 0.0
    %204 = vmatprep.subr.mxu0 0.0
    %205 = vmatpush1.msra.mxu0 0.0
    %206 = vmatprep.subr.mxu0 0.0
    %207 = vmatpush1.msra.mxu0 0.0
    %208 = vmatprep.subr.mxu0 0.0
    %209 = vmatpush1.msra.mxu0 0.0
    %210 = vmatprep.subr.mxu0 0.0
    %211 = vmatpush1.msra.mxu0 0.0
    %212 = vmatprep.subr.mxu0 0.0
    %213 = vmatpush1.msra.mxu0 0.0
    %214 = vmatprep.subr.mxu0 0.0
    %215 = vmatpush1.msra.mxu0 0.0
    %216 = vmatprep.subr.mxu0 0.0
    %217 = vmatpush1.msra.mxu0 0.0
    %218 = vmatprep.subr.mxu0 0.0
    %219 = vmatpush1.msra.mxu0 0.0
    %220 = vmatprep.subr.mxu0 0.0
    %221 = vmatpush1.msra.mxu0 0.0
    %222 = vmatprep.subr.mxu0 0.0
    %223 = vmatpush1.msra.mxu0 0.0
    %224 = vmatprep.subr.mxu0 0.0
    %225 = vmatpush1.msra.mxu0 0.0
    %226 = vmatprep.subr.mxu0 0.0
    %227 = vmatpush1.msra.mxu0 0.0
    %228 = vmatprep.subr.mxu0 0.0
    %229 = vmatpush1.msra.mxu0 0.0
    %230 = vmatprep.subr.mxu0 0.0
    %231 = vmatpush1.msra.mxu0 0.0
    %232 = vmatprep.subr.mxu0 0.0
    %233 = vmatpush1.msra.mxu0 0.0
    %234 = vmatprep.subr.mxu0 0.0
    %235 = vmatpush1.msra.mxu0 0.0
    %236 = vmatprep.subr.mxu0 0.0
    %237 = vmatpush1.msra.mxu0 0.0
    %238 = vmatprep.subr.mxu0 0.0
    %239 = vmatpush1.msra.mxu0 0.0
    %240 = vmatprep.subr.mxu0 0.0
    %241 = vmatpush1.msra.mxu0 0.0
    %242 = vmatprep.subr.mxu0 0.0
    %243 = vmatpush1.msra.mxu0 0.0
    %244 = vmatprep.subr.mxu0 0.0
    %245 = vmatpush1.msra.mxu0 0.0
    %246 = vmatprep.subr.mxu0 0.0
    %247 = vmatpush1.msra.mxu0 0.0
    %248 = vmatprep.subr.mxu0 0.0
    %249 = vmatpush1.msra.mxu0 0.0
    %250 = vmatprep.subr.mxu0 0.0
    %251 = vmatpush1.msra.mxu0 0.0
    %252 = vmatprep.mubr.f32.mxu0 0.0
    %253 = vmatmul.mubr.f32.gmra.mrb[0].mxu0 %v183
    %v254 = vpop.f32.mrb[0].mxu0
    %v255 = vadd.f32 0.0, %v254
    %v256 = vpop.f32.mrb[0].mxu0
    %257 = vmatprep.mubr.f32.mxu0 0.0
    %258 = vmatmul.mubr.f32.gmra.mrb[0].mxu0 %v186
    %v259 = vpop.f32.mrb[0].mxu0
    %v260 = vadd.f32 0.0, %v259
    %v261 = vpop.f32.mrb[0].mxu0
    %262 = vdwg.mxu0
    %263 = vst [vmem:[#allocation5] sm:$0xff] %v151
    %264 = vst [vmem:[#allocation5 + $0x18] sm:$0xff] %v156
    %265 = vst [vmem:[#allocation5 + $0x8] sm:$0xff] %v255
    %266 = vst [vmem:[#allocation5 + $0x20] sm:$0xff] %v260
    %267 = vst [vmem:[#allocation5 + $0x10] sm:$0xff] %v161
    %268 = vst [vmem:[#allocation5 + $0x28] sm:$0xff] %v166
    // Predicated region
    $region18: #{tpu_custom_call.1} parent=1 // pred_check
      _
    $region19: #{tpu_custom_call.1} parent=1 // pred_check_branch
      %270 = sbr.rel (0) target = $region21
    $region20: #{tpu_custom_call.1} parent=1 // pred_region
      %s272 = ssub.s32 768, 768
      %273 = vsyncadd [#allocation4], %s272
      %s274 = sshll.u32 [#allocation5], 4
      %s275 = int_to_ptr.vmem [resolvable:$true] %s274
      %280 = dma.vmem_to_hbm [thread:$0]  %s275, 768, %s3, [#allocation4], 384, 384, 24
    $region21: #{tpu_custom_call.1} parent=1 // pred_fallthru
      _
    // Predicated region
    $region22: #{tpu_custom_call.1} parent=1 // pred_check
      _
    $region23: #{tpu_custom_call.1} parent=1 // pred_check_branch
      %282 = sbr.rel (0) target = $region25
    $region24: #{tpu_custom_call.1} parent=1 // pred_region
      %283 = dma.done [#allocation4], 768
    $region25: #{tpu_custom_call.1} parent=1 // pred_fallthru
      _
    %284 = vsyncpa [#allocation3], 1
    %285 = vsyncpa [#allocation4], 1

</llo_original>
